<compile_context>
chip_gen: v5e
topology: v5e:2x2
jax: 0.10.0
libtpu: 0.0.40
codegen_flags: <defaults>
</compile_context>

<pallas_src>
import jax
import jax.numpy as jnp
from jax.experimental import pallas as pl
from jax.experimental.pallas import tpu as pltpu


# --------------------------------------------------------------------------
# In-kernel helpers (traced inline into the fused kernels)
# --------------------------------------------------------------------------
def _bf16(a):
    return a.astype(jnp.bfloat16)


def _attn_bmm(q, c, scale):
    """softmax(q @ c^T * scale, axis=-1) @ c  — bf16 MXU operands, f32 softmax."""
    s = jax.lax.dot_general(
        _bf16(q), _bf16(c), (((1,), (1,)), ((), ())),
        preferred_element_type=jnp.float32) * scale
    s = s - jnp.max(s, axis=-1, keepdims=True)          # numerically stable
    p = jnp.exp(s)
    p = p * pl.reciprocal(jnp.sum(p, axis=-1, keepdims=True), approx=True)
    return jnp.dot(_bf16(p), _bf16(c), preferred_element_type=jnp.float32)


def _gcn_encode(feat, adj, w1, w23):
    """GVAE graph-conv encoder with packed (mean | logvar) head.
       h  = relu(adj @ (feat @ W1));  ml = adj @ (h @ W23)  -> (N, 2H)."""
    adj_b = _bf16(adj)
    h = jnp.dot(adj_b,
                _bf16(jnp.dot(_bf16(feat), w1, preferred_element_type=jnp.float32)),
                preferred_element_type=jnp.float32)
    h = jnp.maximum(h, 0.0)
    ml = jnp.dot(adj_b,
                 _bf16(jnp.dot(_bf16(h), w23, preferred_element_type=jnp.float32)),
                 preferred_element_type=jnp.float32)
    return ml


def _decode(z, w, b):
    # TODO(synk): GVAE.decode/decode1 source not provided; assumed linear +
    #             sigmoid feature decoder that does not condition on the
    #             original features (2nd torch arg treated as recon target).
    o = jnp.dot(_bf16(z), w, preferred_element_type=jnp.float32) + b.astype(jnp.float32)
    return jax.nn.sigmoid(o)


def _l2norm(v):
    # F.normalize(x, p=2, dim=-1), eps = 1e-12
    ss = jnp.sum(v * v, axis=-1, keepdims=True)
    return v * jax.lax.rsqrt(jnp.maximum(ss, 1e-24))


# --------------------------------------------------------------------------
# Fused training kernel (volatile == False path): one grid step per batch elem
# --------------------------------------------------------------------------
def _train_kernel(x_ref, y_ref, adj_v_ref, adj_t_ref, eps_x_ref, eps_y_ref,
                  w1_v_ref, w23_v_ref, w1_t_ref, w23_t_ref,
                  wd1_ref, bd1_ref, wd_ref, bd_ref,
                  mean_x_ref, logvar_x_ref, rec_x_ref,
                  mean_y_ref, logvar_y_ref, rec_y_ref):
    H = wd1_ref.shape[0]
    x = x_ref[0].astype(jnp.float32)
    y = y_ref[0].astype(jnp.float32)

    # x_attn = intra_relation(x, x, 8);  x = bmm(x_attn, x)
    xh = _attn_bmm(x, x, 8.0)

    # GVAE encoders (image & text), packed mean|logvar heads
    ml_x = _gcn_encode(xh, adj_v_ref[0], w1_v_ref[...], w23_v_ref[...])
    ml_y = _gcn_encode(y, adj_t_ref[0], w1_t_ref[...], w23_t_ref[...])
    mean_x, logvar_x = ml_x[:, :H], ml_x[:, H:]
    mean_y, logvar_y = ml_y[:, :H], ml_y[:, H:]
    mean_x_ref[0] = mean_x.astype(mean_x_ref.dtype)
    logvar_x_ref[0] = logvar_x.astype(logvar_x_ref.dtype)
    mean_y_ref[0] = mean_y.astype(mean_y_ref.dtype)
    logvar_y_ref[0] = logvar_y.astype(logvar_y_ref.dtype)

    # reparameterize  z = mean + exp(logvar) * eps
    # (Kipf-VGAE convention: logvar treated as log-std; noise is supplied from
    #  the wrapper — could also be generated in-kernel with pltpu.prng_seed.)
    latent_x = mean_x + jnp.exp(logvar_x) * eps_x_ref[0].astype(jnp.float32)
    latent_y = mean_y + jnp.exp(logvar_y) * eps_y_ref[0].astype(jnp.float32)

    # cross dot-product attention (imagepostselfattention, method='dot')
    latent_x_final = _attn_bmm(latent_x, latent_y, 1.0)
    latent_y_final = _attn_bmm(latent_y, latent_x, 1.0)

    # decoders
    rec_x_ref[0] = _decode(latent_x_final, wd1_ref[...], bd1_ref[...]).astype(rec_x_ref.dtype)
    rec_y_ref[0] = _decode(latent_y_final, wd_ref[...], bd_ref[...]).astype(rec_y_ref.dtype)


# --------------------------------------------------------------------------
# Fused eval kernel (volatile == True path): L2-normalized means
# --------------------------------------------------------------------------
def _eval_kernel(x_ref, y_ref, adj_v_ref, adj_t_ref,
                 w1_v_ref, w23_v_ref, w1_t_ref, w23_t_ref,
                 nmx_ref, nmy_ref):
    H = nmx_ref.shape[-1]
    x = x_ref[0].astype(jnp.float32)
    y = y_ref[0].astype(jnp.float32)
    xh = _attn_bmm(x, x, 8.0)
    ml_x = _gcn_encode(xh, adj_v_ref[0], w1_v_ref[...], w23_v_ref[...])
    ml_y = _gcn_encode(y, adj_t_ref[0], w1_t_ref[...], w23_t_ref[...])
    nmx_ref[0] = _l2norm(ml_x[:, :H]).astype(nmx_ref.dtype)
    nmy_ref[0] = _l2norm(ml_y[:, :H]).astype(nmy_ref.dtype)


# --------------------------------------------------------------------------
# BlockSpec helpers
# --------------------------------------------------------------------------
def _per_batch(shape):
    # one block per grid step along the batch axis
    return pl.BlockSpec(shape, lambda b: (b, 0, 0))


def _shared(shape):
    # constant block index -> Pallas DMAs the weight exactly once (resident)
    return pl.BlockSpec(shape, lambda b: (0,) * len(shape))


# --------------------------------------------------------------------------
# Wrappers
# --------------------------------------------------------------------------
def tripletnet_train_call(params, x, y, adj_v, adj_t, eps_x, eps_y):
    B, N, D = x.shape
    _, M, _ = y.shape
    H = params["wd1"].shape[0]

    # bf16 weights: half the weight DMA, native MXU operand dtype.
    wb = {k: params[k].astype(jnp.bfloat16)
          for k in ("w1_v", "w23_v", "w1_t", "w23_t", "wd1", "wd")}

    out_shape = (
        jax.ShapeDtypeStruct((B, N, H), x.dtype),   # mean_x
        jax.ShapeDtypeStruct((B, N, H), x.dtype),   # logvar_x
        jax.ShapeDtypeStruct((B, N, D), x.dtype),   # reconstruct_x
        jax.ShapeDtypeStruct((B, M, H), y.dtype),   # mean_y
        jax.ShapeDtypeStruct((B, M, H), y.dtype),   # logvar_y
        jax.ShapeDtypeStruct((B, M, D), y.dtype),   # reconstruct_y
    )
    return pl.pallas_call(
        _train_kernel,
        out_shape=out_shape,
        grid=(B,),
        in_specs=[
            _per_batch((1, N, D)), _per_batch((1, M, D)),
            _per_batch((1, N, N)), _per_batch((1, M, M)),
            _per_batch((1, N, H)), _per_batch((1, M, H)),
            _shared((D, D)), _shared((D, 2 * H)),
            _shared((D, D)), _shared((D, 2 * H)),
            _shared((H, D)), _shared((1, D)),
            _shared((H, D)), _shared((1, D)),
        ],
        out_specs=(
            _per_batch((1, N, H)), _per_batch((1, N, H)), _per_batch((1, N, D)),
            _per_batch((1, M, H)), _per_batch((1, M, H)), _per_batch((1, M, D)),
        ),
        compiler_params=pltpu.CompilerParams(dimension_semantics=("parallel",)),
    )(x, y, adj_v, adj_t, eps_x, eps_y,
      wb["w1_v"], wb["w23_v"], wb["w1_t"], wb["w23_t"],
      wb["wd1"], params["bd1"], wb["wd"], params["bd"])


def tripletnet_eval_call(params, x, y, adj_v, adj_t):
    B, N, D = x.shape
    _, M, _ = y.shape
    H = params["wd1"].shape[0]
    wb = {k: params[k].astype(jnp.bfloat16)
          for k in ("w1_v", "w23_v", "w1_t", "w23_t")}
    return pl.pallas_call(
        _eval_kernel,
        out_shape=(jax.ShapeDtypeStruct((B, N, H), x.dtype),
                   jax.ShapeDtypeStruct((B, M, H), y.dtype)),
        grid=(B,),
        in_specs=[
            _per_batch((1, N, D)), _per_batch((1, M, D)),
            _per_batch((1, N, N)), _per_batch((1, M, M)),
            _shared((D, D)), _shared((D, 2 * H)),
            _shared((D, D)), _shared((D, 2 * H)),
        ],
        out_specs=(_per_batch((1, N, H)), _per_batch((1, M, H))),
        compiler_params=pltpu.CompilerParams(dimension_semantics=("parallel",)),
    )(x, y, adj_v, adj_t, wb["w1_v"], wb["w23_v"], wb["w1_t"], wb["w23_t"])


# --------------------------------------------------------------------------
# Parameter init (mean/logvar heads packed into one (D, 2H) matrix) + forward
# --------------------------------------------------------------------------
def init_tripletnet_params(key, embed_size):
    D = embed_size
    H = embed_size // 2
    keys = jax.random.split(key, 8)

    def glorot(k, shape):
        fan_in, fan_out = shape
        scale = jnp.sqrt(6.0 / (fan_in + fan_out))
        return jax.random.uniform(k, shape, jnp.float32, -scale, scale)

    return {
        # image GCN encoder (W2 | W3 packed -> one head matmul)
        "w1_v": glorot(keys[0], (D, D)),
        "w23_v": jnp.concatenate([glorot(keys[1], (D, H)),
                                  glorot(keys[2], (D, H))], axis=1),
        # text GCN encoder
        "w1_t": glorot(keys[3], (D, D)),
        "w23_t": jnp.concatenate([glorot(keys[4], (D, H)),
                                  glorot(keys[5], (D, H))], axis=1),
        # decoders (decode1 -> image features, decode -> text features)
        "wd1": glorot(keys[6], (H, D)),
        "bd1": jnp.zeros((1, D), jnp.float32),
        "wd": glorot(keys[7], (H, D)),
        "bd": jnp.zeros((1, D), jnp.float32),
    }


def tripletnet_forward(params, x, y, adj_v, adj_t, volatile, key):
    if volatile:
        return tripletnet_eval_call(params, x, y, adj_v, adj_t)

    # torch.randn_like replaced by deterministic jax.random noise, fed to the
    # fused kernel as an input (one kernel consumes everything).
    H = params["wd1"].shape[0]
    k1, k2 = jax.random.split(key)
    eps_x = jax.random.normal(k1, (x.shape[0], x.shape[1], H), jnp.float32)
    eps_y = jax.random.normal(k2, (y.shape[0], y.shape[1], H), jnp.float32)
    return tripletnet_train_call(params, x, y, adj_v, adj_t, eps_x, eps_y)


if __name__ == "__main__":
    key = jax.random.PRNGKey(0)
    B, N, M, D = 2, 8, 8, 32   # batch, image regions, text tokens, embed_size
    k_params, kx, ky, kav, kat, keps = jax.random.split(key, 6)

    params = init_tripletnet_params(k_params, D)
    x = jax.random.normal(kx, (B, N, D), jnp.float32)
    y = jax.random.normal(ky, (B, M, D), jnp.float32)
    # row-stochastic (normalized) soft adjacency matrices
    adj_v = jax.nn.softmax(jax.random.normal(kav, (B, N, N), jnp.float32), axis=-1)
    adj_t = jax.nn.softmax(jax.random.normal(kat, (B, M, M), jnp.float32), axis=-1)

    # training path (volatile=False): full fused VAE + cross-attention + decode
    outs = tripletnet_forward(params, x, y, adj_v, adj_t, volatile=False, key=keps)
    jax.block_until_ready(outs)

    # inference path (volatile=True): L2-normalized means
    outs_eval = tripletnet_forward(params, x, y, adj_v, adj_t, volatile=True, key=keps)
    jax.block_until_ready(outs_eval)

    print("KERNEL_OK")
</pallas_src>

<mosaic_0001>
module attributes {stable_mosaic.version = 11 : i64} {
  func.func @_train_kernel(%arg0: i32, %arg1: memref<1x8x32xf32, #tpu.memory_space<vmem>>, %arg2: memref<1x8x32xf32, #tpu.memory_space<vmem>>, %arg3: memref<1x8x8xf32, #tpu.memory_space<vmem>>, %arg4: memref<1x8x8xf32, #tpu.memory_space<vmem>>, %arg5: memref<1x8x16xf32, #tpu.memory_space<vmem>>, %arg6: memref<1x8x16xf32, #tpu.memory_space<vmem>>, %arg7: memref<32x32xbf16, #tpu.memory_space<vmem>>, %arg8: memref<32x32xbf16, #tpu.memory_space<vmem>>, %arg9: memref<32x32xbf16, #tpu.memory_space<vmem>>, %arg10: memref<32x32xbf16, #tpu.memory_space<vmem>>, %arg11: memref<16x32xbf16, #tpu.memory_space<vmem>>, %arg12: memref<1x32xf32, #tpu.memory_space<vmem>>, %arg13: memref<16x32xbf16, #tpu.memory_space<vmem>>, %arg14: memref<1x32xf32, #tpu.memory_space<vmem>>, %arg15: memref<1x8x16xf32, #tpu.memory_space<vmem>>, %arg16: memref<1x8x16xf32, #tpu.memory_space<vmem>>, %arg17: memref<1x8x32xf32, #tpu.memory_space<vmem>>, %arg18: memref<1x8x16xf32, #tpu.memory_space<vmem>>, %arg19: memref<1x8x16xf32, #tpu.memory_space<vmem>>, %arg20: memref<1x8x32xf32, #tpu.memory_space<vmem>>) attributes {dimension_semantics = [#tpu.dimension_semantics<parallel>], iteration_bounds = array<i64: 2>, scalar_prefetch = 0 : i64, scratch_operands = 0 : i64, tpu.core_type = #tpu.core_type<tc>, window_params = [{transform_indices = @transform_0, window_bounds = array<i64: 1, 8, 32>}, {transform_indices = @transform_1, window_bounds = array<i64: 1, 8, 32>}, {transform_indices = @transform_2, window_bounds = array<i64: 1, 8, 8>}, {transform_indices = @transform_3, window_bounds = array<i64: 1, 8, 8>}, {transform_indices = @transform_4, window_bounds = array<i64: 1, 8, 16>}, {transform_indices = @transform_5, window_bounds = array<i64: 1, 8, 16>}, {pipeline_mode = #tpu.pipeline_mode<synchronous>, transform_indices = @transform_6, window_bounds = array<i64: 32, 32>}, {pipeline_mode = #tpu.pipeline_mode<synchronous>, transform_indices = @transform_7, window_bounds = array<i64: 32, 32>}, {pipeline_mode = #tpu.pipeline_mode<synchronous>, transform_indices = @transform_8, window_bounds = array<i64: 32, 32>}, {pipeline_mode = #tpu.pipeline_mode<synchronous>, transform_indices = @transform_9, window_bounds = array<i64: 32, 32>}, {pipeline_mode = #tpu.pipeline_mode<synchronous>, transform_indices = @transform_10, window_bounds = array<i64: 16, 32>}, {pipeline_mode = #tpu.pipeline_mode<synchronous>, transform_indices = @transform_11, window_bounds = array<i64: 1, 32>}, {pipeline_mode = #tpu.pipeline_mode<synchronous>, transform_indices = @transform_12, window_bounds = array<i64: 16, 32>}, {pipeline_mode = #tpu.pipeline_mode<synchronous>, transform_indices = @transform_13, window_bounds = array<i64: 1, 32>}, {transform_indices = @transform_14, window_bounds = array<i64: 1, 8, 16>}, {transform_indices = @transform_15, window_bounds = array<i64: 1, 8, 16>}, {transform_indices = @transform_16, window_bounds = array<i64: 1, 8, 32>}, {transform_indices = @transform_17, window_bounds = array<i64: 1, 8, 16>}, {transform_indices = @transform_18, window_bounds = array<i64: 1, 8, 16>}, {transform_indices = @transform_19, window_bounds = array<i64: 1, 8, 32>}]} {
    %c0 = arith.constant 0 : index
    %c0_0 = arith.constant 0 : index
    %c0_1 = arith.constant 0 : index
    %0 = vector.load %arg1[%c0, %c0_0, %c0_1] : memref<1x8x32xf32, #tpu.memory_space<vmem>>, vector<1x8x32xf32>
    %1 = vector.shape_cast %0 : vector<1x8x32xf32> to vector<8x32xf32>
    %c0_2 = arith.constant 0 : index
    %c0_3 = arith.constant 0 : index
    %c0_4 = arith.constant 0 : index
    %2 = vector.load %arg2[%c0_2, %c0_3, %c0_4] : memref<1x8x32xf32, #tpu.memory_space<vmem>>, vector<1x8x32xf32>
    %3 = vector.shape_cast %2 : vector<1x8x32xf32> to vector<8x32xf32>
    %4 = arith.truncf %1 : vector<8x32xf32> to vector<8x32xbf16>
    %5 = arith.truncf %1 : vector<8x32xf32> to vector<8x32xbf16>
    %cst = arith.constant dense<0.000000e+00> : vector<8x8xf32>
    %6 = tpu.matmul %4, %5, %cst {dimension_numbers = #tpu.dot_dimension_numbers<[1], [1], [0], [0], [0, 0, 1, 0], [], []>} : vector<8x32xbf16>, vector<8x32xbf16>, vector<8x8xf32> -> vector<8x8xf32>
    %cst_5 = arith.constant 8.000000e+00 : f32
    %7 = vector.broadcast %cst_5 : f32 to vector<8x8xf32>
    %8 = arith.mulf %6, %7 : vector<8x8xf32>
    %cst_6 = arith.constant dense<0xFF800000> : vector<8xf32>
    %9 = vector.multi_reduction <maximumf>, %8, %cst_6 [1] : vector<8x8xf32> to vector<8xf32>
    %10 = vector.shape_cast %9 : vector<8xf32> to vector<8x1xf32>
    %11 = vector.broadcast %10 : vector<8x1xf32> to vector<8x8xf32>
    %12 = arith.subf %8, %11 : vector<8x8xf32>
    %13 = math.exp %12 : vector<8x8xf32>
    %cst_7 = arith.constant dense<0.000000e+00> : vector<8xf32>
    %14 = vector.multi_reduction <add>, %13, %cst_7 [1] : vector<8x8xf32> to vector<8xf32>
    %15 = vector.shape_cast %14 : vector<8xf32> to vector<8x1xf32>
    %16 = tpu.reciprocal %15 {approx = true} : vector<8x1xf32> -> vector<8x1xf32>
    %17 = vector.broadcast %16 : vector<8x1xf32> to vector<8x8xf32>
    %18 = arith.mulf %13, %17 : vector<8x8xf32>
    %19 = arith.truncf %18 : vector<8x8xf32> to vector<8x8xbf16>
    %20 = arith.truncf %1 : vector<8x32xf32> to vector<8x32xbf16>
    %cst_8 = arith.constant dense<0.000000e+00> : vector<8x32xf32>
    %21 = tpu.matmul %19, %20, %cst_8 {dimension_numbers = #tpu.dot_dimension_numbers<[1], [0], [0], [1], [0, 0, 1, 1], [], []>} : vector<8x8xbf16>, vector<8x32xbf16>, vector<8x32xf32> -> vector<8x32xf32>
    %c0_9 = arith.constant 0 : index
    %c0_10 = arith.constant 0 : index
    %c0_11 = arith.constant 0 : index
    %22 = vector.load %arg3[%c0_9, %c0_10, %c0_11] : memref<1x8x8xf32, #tpu.memory_space<vmem>>, vector<1x8x8xf32>
    %23 = vector.shape_cast %22 : vector<1x8x8xf32> to vector<8x8xf32>
    %c0_12 = arith.constant 0 : index
    %c0_13 = arith.constant 0 : index
    %24 = vector.load %arg7[%c0_12, %c0_13] : memref<32x32xbf16, #tpu.memory_space<vmem>>, vector<32x32xbf16>
    %c0_14 = arith.constant 0 : index
    %c0_15 = arith.constant 0 : index
    %25 = vector.load %arg8[%c0_14, %c0_15] : memref<32x32xbf16, #tpu.memory_space<vmem>>, vector<32x32xbf16>
    %26 = arith.truncf %23 : vector<8x8xf32> to vector<8x8xbf16>
    %27 = arith.truncf %21 : vector<8x32xf32> to vector<8x32xbf16>
    %cst_16 = arith.constant dense<0.000000e+00> : vector<8x32xf32>
    %28 = tpu.matmul %27, %24, %cst_16 {dimension_numbers = #tpu.dot_dimension_numbers<[1], [0], [0], [1], [0, 0, 1, 1], [], []>} : vector<8x32xbf16>, vector<32x32xbf16>, vector<8x32xf32> -> vector<8x32xf32>
    %29 = arith.truncf %28 : vector<8x32xf32> to vector<8x32xbf16>
    %cst_17 = arith.constant dense<0.000000e+00> : vector<8x32xf32>
    %30 = tpu.matmul %26, %29, %cst_17 {dimension_numbers = #tpu.dot_dimension_numbers<[1], [0], [0], [1], [0, 0, 1, 1], [], []>} : vector<8x8xbf16>, vector<8x32xbf16>, vector<8x32xf32> -> vector<8x32xf32>
    %cst_18 = arith.constant 0.000000e+00 : f32
    %31 = vector.broadcast %cst_18 : f32 to vector<8x32xf32>
    %32 = arith.maximumf %30, %31 : vector<8x32xf32>
    %33 = arith.truncf %32 : vector<8x32xf32> to vector<8x32xbf16>
    %cst_19 = arith.constant dense<0.000000e+00> : vector<8x32xf32>
    %34 = tpu.matmul %33, %25, %cst_19 {dimension_numbers = #tpu.dot_dimension_numbers<[1], [0], [0], [1], [0, 0, 1, 1], [], []>} : vector<8x32xbf16>, vector<32x32xbf16>, vector<8x32xf32> -> vector<8x32xf32>
    %35 = arith.truncf %34 : vector<8x32xf32> to vector<8x32xbf16>
    %cst_20 = arith.constant dense<0.000000e+00> : vector<8x32xf32>
    %36 = tpu.matmul %26, %35, %cst_20 {dimension_numbers = #tpu.dot_dimension_numbers<[1], [0], [0], [1], [0, 0, 1, 1], [], []>} : vector<8x8xbf16>, vector<8x32xbf16>, vector<8x32xf32> -> vector<8x32xf32>
    %c0_21 = arith.constant 0 : index
    %c0_22 = arith.constant 0 : index
    %c0_23 = arith.constant 0 : index
    %37 = vector.load %arg4[%c0_21, %c0_22, %c0_23] : memref<1x8x8xf32, #tpu.memory_space<vmem>>, vector<1x8x8xf32>
    %38 = vector.shape_cast %37 : vector<1x8x8xf32> to vector<8x8xf32>
    %c0_24 = arith.constant 0 : index
    %c0_25 = arith.constant 0 : index
    %39 = vector.load %arg9[%c0_24, %c0_25] : memref<32x32xbf16, #tpu.memory_space<vmem>>, vector<32x32xbf16>
    %c0_26 = arith.constant 0 : index
    %c0_27 = arith.constant 0 : index
    %40 = vector.load %arg10[%c0_26, %c0_27] : memref<32x32xbf16, #tpu.memory_space<vmem>>, vector<32x32xbf16>
    %41 = arith.truncf %38 : vector<8x8xf32> to vector<8x8xbf16>
    %42 = arith.truncf %3 : vector<8x32xf32> to vector<8x32xbf16>
    %cst_28 = arith.constant dense<0.000000e+00> : vector<8x32xf32>
    %43 = tpu.matmul %42, %39, %cst_28 {dimension_numbers = #tpu.dot_dimension_numbers<[1], [0], [0], [1], [0, 0, 1, 1], [], []>} : vector<8x32xbf16>, vector<32x32xbf16>, vector<8x32xf32> -> vector<8x32xf32>
    %44 = arith.truncf %43 : vector<8x32xf32> to vector<8x32xbf16>
    %cst_29 = arith.constant dense<0.000000e+00> : vector<8x32xf32>
    %45 = tpu.matmul %41, %44, %cst_29 {dimension_numbers = #tpu.dot_dimension_numbers<[1], [0], [0], [1], [0, 0, 1, 1], [], []>} : vector<8x8xbf16>, vector<8x32xbf16>, vector<8x32xf32> -> vector<8x32xf32>
    %cst_30 = arith.constant 0.000000e+00 : f32
    %46 = vector.broadcast %cst_30 : f32 to vector<8x32xf32>
    %47 = arith.maximumf %45, %46 : vector<8x32xf32>
    %48 = arith.truncf %47 : vector<8x32xf32> to vector<8x32xbf16>
    %cst_31 = arith.constant dense<0.000000e+00> : vector<8x32xf32>
    %49 = tpu.matmul %48, %40, %cst_31 {dimension_numbers = #tpu.dot_dimension_numbers<[1], [0], [0], [1], [0, 0, 1, 1], [], []>} : vector<8x32xbf16>, vector<32x32xbf16>, vector<8x32xf32> -> vector<8x32xf32>
    %50 = arith.truncf %49 : vector<8x32xf32> to vector<8x32xbf16>
    %cst_32 = arith.constant dense<0.000000e+00> : vector<8x32xf32>
    %51 = tpu.matmul %41, %50, %cst_32 {dimension_numbers = #tpu.dot_dimension_numbers<[1], [0], [0], [1], [0, 0, 1, 1], [], []>} : vector<8x8xbf16>, vector<8x32xbf16>, vector<8x32xf32> -> vector<8x32xf32>
    %52 = vector.extract_strided_slice %36 {offsets = [0, 0], sizes = [8, 16], strides = [1, 1]} : vector<8x32xf32> to vector<8x16xf32>
    %53 = vector.extract_strided_slice %36 {offsets = [0, 16], sizes = [8, 16], strides = [1, 1]} : vector<8x32xf32> to vector<8x16xf32>
    %54 = vector.extract_strided_slice %51 {offsets = [0, 0], sizes = [8, 16], strides = [1, 1]} : vector<8x32xf32> to vector<8x16xf32>
    %55 = vector.extract_strided_slice %51 {offsets = [0, 16], sizes = [8, 16], strides = [1, 1]} : vector<8x32xf32> to vector<8x16xf32>
    %c0_33 = arith.constant 0 : index
    %c0_34 = arith.constant 0 : index
    %c0_35 = arith.constant 0 : index
    %56 = vector.load %arg15[%c0_33, %c0_34, %c0_35] : memref<1x8x16xf32, #tpu.memory_space<vmem>>, vector<1x8x16xf32>
    %57 = vector.shape_cast %56 : vector<1x8x16xf32> to vector<8x16xf32>
    %58 = vector.shape_cast %52 : vector<8x16xf32> to vector<1x8x16xf32>
    tpu.vector_store %arg15[%c0_33, %c0_34, %c0_35], %58 {strides = array<i32>} : memref<1x8x16xf32, #tpu.memory_space<vmem>>, vector<1x8x16xf32>,
    %c0_36 = arith.constant 0 : index
    %c0_37 = arith.constant 0 : index
    %c0_38 = arith.constant 0 : index
    %59 = vector.load %arg16[%c0_36, %c0_37, %c0_38] : memref<1x8x16xf32, #tpu.memory_space<vmem>>, vector<1x8x16xf32>
    %60 = vector.shape_cast %59 : vector<1x8x16xf32> to vector<8x16xf32>
    %61 = vector.shape_cast %53 : vector<8x16xf32> to vector<1x8x16xf32>
    tpu.vector_store %arg16[%c0_36, %c0_37, %c0_38], %61 {strides = array<i32>} : memref<1x8x16xf32, #tpu.memory_space<vmem>>, vector<1x8x16xf32>,
    %c0_39 = arith.constant 0 : index
    %c0_40 = arith.constant 0 : index
    %c0_41 = arith.constant 0 : index
    %62 = vector.load %arg18[%c0_39, %c0_40, %c0_41] : memref<1x8x16xf32, #tpu.memory_space<vmem>>, vector<1x8x16xf32>
    %63 = vector.shape_cast %62 : vector<1x8x16xf32> to vector<8x16xf32>
    %64 = vector.shape_cast %54 : vector<8x16xf32> to vector<1x8x16xf32>
    tpu.vector_store %arg18[%c0_39, %c0_40, %c0_41], %64 {strides = array<i32>} : memref<1x8x16xf32, #tpu.memory_space<vmem>>, vector<1x8x16xf32>,
    %c0_42 = arith.constant 0 : index
    %c0_43 = arith.constant 0 : index
    %c0_44 = arith.constant 0 : index
    %65 = vector.load %arg19[%c0_42, %c0_43, %c0_44] : memref<1x8x16xf32, #tpu.memory_space<vmem>>, vector<1x8x16xf32>
    %66 = vector.shape_cast %65 : vector<1x8x16xf32> to vector<8x16xf32>
    %67 = vector.shape_cast %55 : vector<8x16xf32> to vector<1x8x16xf32>
    tpu.vector_store %arg19[%c0_42, %c0_43, %c0_44], %67 {strides = array<i32>} : memref<1x8x16xf32, #tpu.memory_space<vmem>>, vector<1x8x16xf32>,
    %68 = math.exp %53 : vector<8x16xf32>
    %c0_45 = arith.constant 0 : index
    %c0_46 = arith.constant 0 : index
    %c0_47 = arith.constant 0 : index
    %69 = vector.load %arg5[%c0_45, %c0_46, %c0_47] : memref<1x8x16xf32, #tpu.memory_space<vmem>>, vector<1x8x16xf32>
    %70 = vector.shape_cast %69 : vector<1x8x16xf32> to vector<8x16xf32>
    %71 = arith.mulf %68, %70 : vector<8x16xf32>
    %72 = arith.addf %52, %71 : vector<8x16xf32>
    %73 = math.exp %55 : vector<8x16xf32>
    %c0_48 = arith.constant 0 : index
    %c0_49 = arith.constant 0 : index
    %c0_50 = arith.constant 0 : index
    %74 = vector.load %arg6[%c0_48, %c0_49, %c0_50] : memref<1x8x16xf32, #tpu.memory_space<vmem>>, vector<1x8x16xf32>
    %75 = vector.shape_cast %74 : vector<1x8x16xf32> to vector<8x16xf32>
    %76 = arith.mulf %73, %75 : vector<8x16xf32>
    %77 = arith.addf %54, %76 : vector<8x16xf32>
    %78 = arith.truncf %72 : vector<8x16xf32> to vector<8x16xbf16>
    %79 = arith.truncf %77 : vector<8x16xf32> to vector<8x16xbf16>
    %cst_51 = arith.constant dense<0.000000e+00> : vector<8x8xf32>
    %80 = tpu.matmul %78, %79, %cst_51 {dimension_numbers = #tpu.dot_dimension_numbers<[1], [1], [0], [0], [0, 0, 1, 0], [], []>} : vector<8x16xbf16>, vector<8x16xbf16>, vector<8x8xf32> -> vector<8x8xf32>
    %cst_52 = arith.constant 1.000000e+00 : f32
    %81 = vector.broadcast %cst_52 : f32 to vector<8x8xf32>
    %82 = arith.mulf %80, %81 : vector<8x8xf32>
    %cst_53 = arith.constant dense<0xFF800000> : vector<8xf32>
    %83 = vector.multi_reduction <maximumf>, %82, %cst_53 [1] : vector<8x8xf32> to vector<8xf32>
    %84 = vector.shape_cast %83 : vector<8xf32> to vector<8x1xf32>
    %85 = vector.broadcast %84 : vector<8x1xf32> to vector<8x8xf32>
    %86 = arith.subf %82, %85 : vector<8x8xf32>
    %87 = math.exp %86 : vector<8x8xf32>
    %cst_54 = arith.constant dense<0.000000e+00> : vector<8xf32>
    %88 = vector.multi_reduction <add>, %87, %cst_54 [1] : vector<8x8xf32> to vector<8xf32>
    %89 = vector.shape_cast %88 : vector<8xf32> to vector<8x1xf32>
    %90 = tpu.reciprocal %89 {approx = true} : vector<8x1xf32> -> vector<8x1xf32>
    %91 = vector.broadcast %90 : vector<8x1xf32> to vector<8x8xf32>
    %92 = arith.mulf %87, %91 : vector<8x8xf32>
    %93 = arith.truncf %92 : vector<8x8xf32> to vector<8x8xbf16>
    %94 = arith.truncf %77 : vector<8x16xf32> to vector<8x16xbf16>
    %cst_55 = arith.constant dense<0.000000e+00> : vector<8x16xf32>
    %95 = tpu.matmul %93, %94, %cst_55 {dimension_numbers = #tpu.dot_dimension_numbers<[1], [0], [0], [1], [0, 0, 1, 1], [], []>} : vector<8x8xbf16>, vector<8x16xbf16>, vector<8x16xf32> -> vector<8x16xf32>
    %96 = arith.truncf %77 : vector<8x16xf32> to vector<8x16xbf16>
    %97 = arith.truncf %72 : vector<8x16xf32> to vector<8x16xbf16>
    %cst_56 = arith.constant dense<0.000000e+00> : vector<8x8xf32>
    %98 = tpu.matmul %96, %97, %cst_56 {dimension_numbers = #tpu.dot_dimension_numbers<[1], [1], [0], [0], [0, 0, 1, 0], [], []>} : vector<8x16xbf16>, vector<8x16xbf16>, vector<8x8xf32> -> vector<8x8xf32>
    %cst_57 = arith.constant 1.000000e+00 : f32
    %99 = vector.broadcast %cst_57 : f32 to vector<8x8xf32>
    %100 = arith.mulf %98, %99 : vector<8x8xf32>
    %cst_58 = arith.constant dense<0xFF800000> : vector<8xf32>
    %101 = vector.multi_reduction <maximumf>, %100, %cst_58 [1] : vector<8x8xf32> to vector<8xf32>
    %102 = vector.shape_cast %101 : vector<8xf32> to vector<8x1xf32>
    %103 = vector.broadcast %102 : vector<8x1xf32> to vector<8x8xf32>
    %104 = arith.subf %100, %103 : vector<8x8xf32>
    %105 = math.exp %104 : vector<8x8xf32>
    %cst_59 = arith.constant dense<0.000000e+00> : vector<8xf32>
    %106 = vector.multi_reduction <add>, %105, %cst_59 [1] : vector<8x8xf32> to vector<8xf32>
    %107 = vector.shape_cast %106 : vector<8xf32> to vector<8x1xf32>
    %108 = tpu.reciprocal %107 {approx = true} : vector<8x1xf32> -> vector<8x1xf32>
    %109 = vector.broadcast %108 : vector<8x1xf32> to vector<8x8xf32>
    %110 = arith.mulf %105, %109 : vector<8x8xf32>
    %111 = arith.truncf %110 : vector<8x8xf32> to vector<8x8xbf16>
    %112 = arith.truncf %72 : vector<8x16xf32> to vector<8x16xbf16>
    %cst_60 = arith.constant dense<0.000000e+00> : vector<8x16xf32>
    %113 = tpu.matmul %111, %112, %cst_60 {dimension_numbers = #tpu.dot_dimension_numbers<[1], [0], [0], [1], [0, 0, 1, 1], [], []>} : vector<8x8xbf16>, vector<8x16xbf16>, vector<8x16xf32> -> vector<8x16xf32>
    %c0_61 = arith.constant 0 : index
    %c0_62 = arith.constant 0 : index
    %114 = vector.load %arg11[%c0_61, %c0_62] : memref<16x32xbf16, #tpu.memory_space<vmem>>, vector<16x32xbf16>
    %c0_63 = arith.constant 0 : index
    %c0_64 = arith.constant 0 : index
    %115 = vector.load %arg12[%c0_63, %c0_64] : memref<1x32xf32, #tpu.memory_space<vmem>>, vector<1x32xf32>
    %116 = arith.truncf %95 : vector<8x16xf32> to vector<8x16xbf16>
    %cst_65 = arith.constant dense<0.000000e+00> : vector<8x32xf32>
    %117 = tpu.matmul %116, %114, %cst_65 {dimension_numbers = #tpu.dot_dimension_numbers<[1], [0], [0], [1], [0, 0, 1, 1], [], []>} : vector<8x16xbf16>, vector<16x32xbf16>, vector<8x32xf32> -> vector<8x32xf32>
    %118 = vector.broadcast %115 : vector<1x32xf32> to vector<8x32xf32>
    %119 = arith.addf %117, %118 : vector<8x32xf32>
    %120 = arith.negf %119 : vector<8x32xf32>
    %121 = math.exp %120 : vector<8x32xf32>
    %cst_66 = arith.constant 1.000000e+00 : f32
    %122 = vector.broadcast %cst_66 : f32 to vector<8x32xf32>
    %123 = arith.addf %122, %121 : vector<8x32xf32>
    %124 = arith.divf %122, %123 : vector<8x32xf32>
    %c0_67 = arith.constant 0 : index
    %c0_68 = arith.constant 0 : index
    %c0_69 = arith.constant 0 : index
    %125 = vector.load %arg17[%c0_67, %c0_68, %c0_69] : memref<1x8x32xf32, #tpu.memory_space<vmem>>, vector<1x8x32xf32>
    %126 = vector.shape_cast %125 : vector<1x8x32xf32> to vector<8x32xf32>
    %127 = vector.shape_cast %124 : vector<8x32xf32> to vector<1x8x32xf32>
    tpu.vector_store %arg17[%c0_67, %c0_68, %c0_69], %127 {strides = array<i32>} : memref<1x8x32xf32, #tpu.memory_space<vmem>>, vector<1x8x32xf32>,
    %c0_70 = arith.constant 0 : index
    %c0_71 = arith.constant 0 : index
    %128 = vector.load %arg13[%c0_70, %c0_71] : memref<16x32xbf16, #tpu.memory_space<vmem>>, vector<16x32xbf16>
    %c0_72 = arith.constant 0 : index
    %c0_73 = arith.constant 0 : index
    %129 = vector.load %arg14[%c0_72, %c0_73] : memref<1x32xf32, #tpu.memory_space<vmem>>, vector<1x32xf32>
    %130 = arith.truncf %113 : vector<8x16xf32> to vector<8x16xbf16>
    %cst_74 = arith.constant dense<0.000000e+00> : vector<8x32xf32>
    %131 = tpu.matmul %130, %128, %cst_74 {dimension_numbers = #tpu.dot_dimension_numbers<[1], [0], [0], [1], [0, 0, 1, 1], [], []>} : vector<8x16xbf16>, vector<16x32xbf16>, vector<8x32xf32> -> vector<8x32xf32>
    %132 = vector.broadcast %129 : vector<1x32xf32> to vector<8x32xf32>
    %133 = arith.addf %131, %132 : vector<8x32xf32>
    %134 = arith.negf %133 : vector<8x32xf32>
    %135 = math.exp %134 : vector<8x32xf32>
    %cst_75 = arith.constant 1.000000e+00 : f32
    %136 = vector.broadcast %cst_75 : f32 to vector<8x32xf32>
    %137 = arith.addf %136, %135 : vector<8x32xf32>
    %138 = arith.divf %136, %137 : vector<8x32xf32>
    %c0_76 = arith.constant 0 : index
    %c0_77 = arith.constant 0 : index
    %c0_78 = arith.constant 0 : index
    %139 = vector.load %arg20[%c0_76, %c0_77, %c0_78] : memref<1x8x32xf32, #tpu.memory_space<vmem>>, vector<1x8x32xf32>
    %140 = vector.shape_cast %139 : vector<1x8x32xf32> to vector<8x32xf32>
    %141 = vector.shape_cast %138 : vector<8x32xf32> to vector<1x8x32xf32>
    tpu.vector_store %arg20[%c0_76, %c0_77, %c0_78], %141 {strides = array<i32>} : memref<1x8x32xf32, #tpu.memory_space<vmem>>, vector<1x8x32xf32>,
    return
  }
  func.func @transform_0(%arg0: i32) -> (i32, i32, i32) {
    %c0_i32 = arith.constant 0 : i32
    %c0_i32_0 = arith.constant 0 : i32
    %c0_i32_1 = arith.constant 0 : i32
    return %arg0, %c0_i32, %c0_i32_0 : i32, i32, i32
  }
  func.func @transform_1(%arg0: i32) -> (i32, i32, i32) {
    %c0_i32 = arith.constant 0 : i32
    %c0_i32_0 = arith.constant 0 : i32
    %c0_i32_1 = arith.constant 0 : i32
    return %arg0, %c0_i32, %c0_i32_0 : i32, i32, i32
  }
  func.func @transform_2(%arg0: i32) -> (i32, i32, i32) {
    %c0_i32 = arith.constant 0 : i32
    %c0_i32_0 = arith.constant 0 : i32
    %c0_i32_1 = arith.constant 0 : i32
    return %arg0, %c0_i32, %c0_i32_0 : i32, i32, i32
  }
  func.func @transform_3(%arg0: i32) -> (i32, i32, i32) {
    %c0_i32 = arith.constant 0 : i32
    %c0_i32_0 = arith.constant 0 : i32
    %c0_i32_1 = arith.constant 0 : i32
    return %arg0, %c0_i32, %c0_i32_0 : i32, i32, i32
  }
  func.func @transform_4(%arg0: i32) -> (i32, i32, i32) {
    %c0_i32 = arith.constant 0 : i32
    %c0_i32_0 = arith.constant 0 : i32
    %c0_i32_1 = arith.constant 0 : i32
    return %arg0, %c0_i32, %c0_i32_0 : i32, i32, i32
  }
  func.func @transform_5(%arg0: i32) -> (i32, i32, i32) {
    %c0_i32 = arith.constant 0 : i32
    %c0_i32_0 = arith.constant 0 : i32
    %c0_i32_1 = arith.constant 0 : i32
    return %arg0, %c0_i32, %c0_i32_0 : i32, i32, i32
  }
  func.func @transform_6(%arg0: i32) -> (i32, i32) {
    %c0_i32 = arith.constant 0 : i32
    %c0_i32_0 = arith.constant 0 : i32
    %c0_i32_1 = arith.constant 0 : i32
    return %c0_i32, %c0_i32_0 : i32, i32
  }
  func.func @transform_7(%arg0: i32) -> (i32, i32) {
    %c0_i32 = arith.constant 0 : i32
    %c0_i32_0 = arith.constant 0 : i32
    %c0_i32_1 = arith.constant 0 : i32
    return %c0_i32, %c0_i32_0 : i32, i32
  }
  func.func @transform_8(%arg0: i32) -> (i32, i32) {
    %c0_i32 = arith.constant 0 : i32
    %c0_i32_0 = arith.constant 0 : i32
    %c0_i32_1 = arith.constant 0 : i32
    return %c0_i32, %c0_i32_0 : i32, i32
  }
  func.func @transform_9(%arg0: i32) -> (i32, i32) {
    %c0_i32 = arith.constant 0 : i32
    %c0_i32_0 = arith.constant 0 : i32
    %c0_i32_1 = arith.constant 0 : i32
    return %c0_i32, %c0_i32_0 : i32, i32
  }
  func.func @transform_10(%arg0: i32) -> (i32, i32) {
    %c0_i32 = arith.constant 0 : i32
    %c0_i32_0 = arith.constant 0 : i32
    %c0_i32_1 = arith.constant 0 : i32
    return %c0_i32, %c0_i32_0 : i32, i32
  }
  func.func @transform_11(%arg0: i32) -> (i32, i32) {
    %c0_i32 = arith.constant 0 : i32
    %c0_i32_0 = arith.constant 0 : i32
    %c0_i32_1 = arith.constant 0 : i32
    return %c0_i32, %c0_i32_0 : i32, i32
  }
  func.func @transform_12(%arg0: i32) -> (i32, i32) {
    %c0_i32 = arith.constant 0 : i32
    %c0_i32_0 = arith.constant 0 : i32
    %c0_i32_1 = arith.constant 0 : i32
    return %c0_i32, %c0_i32_0 : i32, i32
  }
  func.func @transform_13(%arg0: i32) -> (i32, i32) {
    %c0_i32 = arith.constant 0 : i32
    %c0_i32_0 = arith.constant 0 : i32
    %c0_i32_1 = arith.constant 0 : i32
    return %c0_i32, %c0_i32_0 : i32, i32
  }
  func.func @transform_14(%arg0: i32) -> (i32, i32, i32) {
    %c0_i32 = arith.constant 0 : i32
    %c0_i32_0 = arith.constant 0 : i32
    %c0_i32_1 = arith.constant 0 : i32
    return %arg0, %c0_i32, %c0_i32_0 : i32, i32, i32
  }
  func.func @transform_15(%arg0: i32) -> (i32, i32, i32) {
    %c0_i32 = arith.constant 0 : i32
    %c0_i32_0 = arith.constant 0 : i32
    %c0_i32_1 = arith.constant 0 : i32
    return %arg0, %c0_i32, %c0_i32_0 : i32, i32, i32
  }
  func.func @transform_16(%arg0: i32) -> (i32, i32, i32) {
    %c0_i32 = arith.constant 0 : i32
    %c0_i32_0 = arith.constant 0 : i32
    %c0_i32_1 = arith.constant 0 : i32
    return %arg0, %c0_i32, %c0_i32_0 : i32, i32, i32
  }
  func.func @transform_17(%arg0: i32) -> (i32, i32, i32) {
    %c0_i32 = arith.constant 0 : i32
    %c0_i32_0 = arith.constant 0 : i32
    %c0_i32_1 = arith.constant 0 : i32
    return %arg0, %c0_i32, %c0_i32_0 : i32, i32, i32
  }
  func.func @transform_18(%arg0: i32) -> (i32, i32, i32) {
    %c0_i32 = arith.constant 0 : i32
    %c0_i32_0 = arith.constant 0 : i32
    %c0_i32_1 = arith.constant 0 : i32
    return %arg0, %c0_i32, %c0_i32_0 : i32, i32, i32
  }
  func.func @transform_19(%arg0: i32) -> (i32, i32, i32) {
    %c0_i32 = arith.constant 0 : i32
    %c0_i32_0 = arith.constant 0 : i32
    %c0_i32_1 = arith.constant 0 : i32
    return %arg0, %c0_i32, %c0_i32_0 : i32, i32, i32
  }
}

</mosaic_0001>

<llo_original>
// kernel: tpu_custom_call.1
$region0: #{tpu_custom_call.1}
  #allocation0 [shape = 'u32[]', space=smem, size = 0x4, offset = 0x4, fixed_abs, tag = 'smem constant byte address 0x4 - core index']
  #allocation1 [shape = 'u32[72,128]{1,0:T(1,128)}', space=vmem, size = 0x9000, scoped, tag = 'internal scratch']
  %s0 = inlined_call_operand.hbm [shape: f32[2,8,32], index: 0, kind: input, shape index: {}]
  %s1 = inlined_call_operand.hbm [shape: f32[2,8,32], index: 1, kind: input, shape index: {}]
  %s2 = inlined_call_operand.hbm [shape: f32[2,8,8], index: 2, kind: input, shape index: {}]
  %s3 = inlined_call_operand.hbm [shape: f32[2,8,8], index: 3, kind: input, shape index: {}]
  %s4 = inlined_call_operand.hbm [shape: f32[2,8,16], index: 4, kind: input, shape index: {}]
  %s5 = inlined_call_operand.hbm [shape: f32[2,8,16], index: 5, kind: input, shape index: {}]
  %s6 = inlined_call_operand.hbm [shape: bf16[32,32], index: 6, kind: input, shape index: {}]
  %s7 = inlined_call_operand.hbm [shape: bf16[32,32], index: 7, kind: input, shape index: {}]
  %s8 = inlined_call_operand.hbm [shape: bf16[32,32], index: 8, kind: input, shape index: {}]
  %s9 = inlined_call_operand.hbm [shape: bf16[32,32], index: 9, kind: input, shape index: {}]
  %s10 = inlined_call_operand.vmem [shape: bf16[16,32], index: 10, kind: input, shape index: {}]
  %s11 = inlined_call_operand.vmem [shape: f32[1,32], index: 11, kind: input, shape index: {}]
  %s12 = inlined_call_operand.hbm [shape: bf16[16,32], index: 12, kind: input, shape index: {}]
  %s13 = inlined_call_operand.vmem [shape: f32[1,32], index: 13, kind: input, shape index: {}]
  %s14 = inlined_call_operand.hbm [shape: f32[2,8,16], index: 14, kind: output, shape index: {0}]
  %s15 = inlined_call_operand.hbm [shape: f32[2,8,16], index: 15, kind: output, shape index: {1}]
  %s16 = inlined_call_operand.hbm [shape: f32[2,8,32], index: 16, kind: output, shape index: {2}]
  %s17 = inlined_call_operand.hbm [shape: f32[2,8,16], index: 17, kind: output, shape index: {3}]
  %s18 = inlined_call_operand.hbm [shape: f32[2,8,16], index: 18, kind: output, shape index: {4}]
  %s19 = inlined_call_operand.hbm [shape: f32[2,8,32], index: 19, kind: output, shape index: {5}]
  %20 = xla_tuple %s14, %s15, %s16, %s17, %s18, %s19
  %s21 = sld [smem:[#allocation0]]
  $region173: #{tpu_custom_call.1} parent=0
    _
  %s23 = ssub.s32 1, %s21
  %s24 = scalar_select 0, %s23, %s21
  $region1: #{tpu_custom_call.1} parent=0
    #allocation2 [shape = 'u8[8192]{0}', space=vmem, size = 0x2000, scoped, tag = 'input window, operand 0']
    #allocation3 [shape = 's32[2]{0}', space=sflag, size = 0x8, scoped, tag = 'scoped memory for tpu_custom_call.1']
    #allocation4 [shape = 's32[2]{0}', space=sflag, size = 0x8, scoped, tag = 'scoped memory for tpu_custom_call.1']
    #allocation5 [shape = 'u8[8192]{0}', space=vmem, size = 0x2000, scoped, tag = 'input window, operand 1']
    #allocation6 [shape = 's32[2]{0}', space=sflag, size = 0x8, scoped, tag = 'scoped memory for tpu_custom_call.1']
    #allocation7 [shape = 'u8[8192]{0}', space=vmem, size = 0x2000, scoped, tag = 'input window, operand 2']
    #allocation8 [shape = 'u8[8192]{0}', space=vmem, size = 0x2000, scoped, tag = 'input window, operand 3']
    #allocation9 [shape = 's32[2]{0}', space=sflag, size = 0x8, scoped, tag = 'scoped memory for tpu_custom_call.1']
    #allocation10 [shape = 'u8[8192]{0}', space=vmem, size = 0x2000, scoped, tag = 'input window, operand 4']
    #allocation11 [shape = 'u8[8192]{0}', space=vmem, size = 0x2000, scoped, tag = 'input window, operand 5']
    #allocation12 [shape = 's32[2]{0}', space=sflag, size = 0x8, scoped, tag = 'scoped memory for tpu_custom_call.1']
    #allocation13 [shape = 'u8[8192]{0}', space=vmem, size = 0x2000, scoped, tag = 'input window, operand 6, single buffered']
    #allocation14 [shape = 'u8[8192]{0}', space=vmem, size = 0x2000, scoped, tag = 'input window, operand 7, single buffered']
    #allocation15 [shape = 's32[1]{0}', space=sflag, size = 0x4, scoped, tag = 'scoped memory for tpu_custom_call.1']
    #allocation16 [shape = 'u8[8192]{0}', space=vmem, size = 0x2000, scoped, tag = 'input window, operand 8, single buffered']
    #allocation17 [shape = 'u8[8192]{0}', space=vmem, size = 0x2000, scoped, tag = 'input window, operand 9, single buffered']
    #allocation18 [shape = 's32[1]{0}', space=sflag, size = 0x4, scoped, tag = 'scoped memory for tpu_custom_call.1']
    #allocation19 [shape = 'u8[4096]{0}', space=vmem, size = 0x1000, scoped, tag = 'input window, operand 12, single buffered']
    #allocation20 [shape = 'u8[8192]{0}', space=vmem, size = 0x2000, scoped, tag = 'output window, operand 0']
    #allocation21 [shape = 'u8[8192]{0}', space=vmem, size = 0x2000, scoped, tag = 'output window, operand 1']
    #allocation22 [shape = 's32[2]{0}', space=sflag, size = 0x8, scoped, tag = 'scoped memory for tpu_custom_call.1']
    #allocation23 [shape = 'u8[8192]{0}', space=vmem, size = 0x2000, scoped, tag = 'output window, operand 2']
    #allocation24 [shape = 'u8[8192]{0}', space=vmem, size = 0x2000, scoped, tag = 'output window, operand 3']
    #allocation25 [shape = 's32[2]{0}', space=sflag, size = 0x8, scoped, tag = 'scoped memory for tpu_custom_call.1']
    #allocation26 [shape = 'u8[8192]{0}', space=vmem, size = 0x2000, scoped, tag = 'output window, operand 4']
    #allocation27 [shape = 'u8[8192]{0}', space=vmem, size = 0x2000, scoped, tag = 'output window, operand 5']
    #allocation28 [shape = 's32[2]{0}', space=sflag, size = 0x8, scoped, tag = 'scoped memory for tpu_custom_call.1']
    %25 = vsyncpa [#allocation3], 0
    %s26 = scalar_lea.sflag [#allocation3], 1
    %27 = vsyncpa %s26, 0
    %28 = vsyncpa [#allocation6], 0
    %s29 = scalar_lea.sflag [#allocation6], 1
    %30 = vsyncpa %s29, 0
    %31 = vsyncpa [#allocation9], 0
    %s32 = scalar_lea.sflag [#allocation9], 1
    %33 = vsyncpa %s32, 0
    %34 = vsyncpa [#allocation12], 0
    %s35 = scalar_lea.sflag [#allocation12], 1
    %36 = vsyncpa %s35, 0
    %37 = vsyncpa [#allocation15], 0
    %38 = vsyncpa [#allocation18], 0
    %39 = vsyncpa [#allocation4], 0
    %s40 = scalar_lea.sflag [#allocation4], 1
    %41 = vsyncpa %s40, 0
    %42 = vsyncpa [#allocation22], 0
    %s43 = scalar_lea.sflag [#allocation22], 1
    %44 = vsyncpa %s43, 0
    %45 = vsyncpa [#allocation25], 0
    %s46 = scalar_lea.sflag [#allocation25], 1
    %47 = vsyncpa %s46, 0
    %48 = vsyncpa [#allocation28], 0
    %s49 = scalar_lea.sflag [#allocation28], 1
    %50 = vsyncpa %s49, 0
    loop: start=0, step=1, limit=4
    $region2: #{tpu_custom_call.1} parent=1 // loop_pre_header
      _
    $region3: #{tpu_custom_call.1} parent=1 // loop_header
      %s52 = sphi 0, %s56
      %p53 = scmp.ge.s32.totalorder %s52, 4
      %s62 = sphi 0, %s64
      %s65 = sphi 0, %s62
      %s66 = sphi 0, %s65
      %s82 = sphi 0, %s66
      %s88 = sphi 0, %s90
      %s91 = sphi 0, %s88
      %s92 = sphi 0, %s91
      %s108 = sphi 0, %s92
      %s114 = sphi 0, %s116
      %s117 = sphi 0, %s114
      %s118 = sphi 0, %s117
      %s134 = sphi 0, %s118
      %s140 = sphi 0, %s142
      %s143 = sphi 0, %s140
      %s144 = sphi 0, %s143
      %s160 = sphi 0, %s144
      %s166 = sphi 0, %s168
      %s169 = sphi 0, %s166
      %s170 = sphi 0, %s169
      %s186 = sphi 0, %s170
      %s192 = sphi 0, %s194
      %s195 = sphi 0, %s192
      %s196 = sphi 0, %s195
      %s212 = sphi 0, %s196
      %s216 = sphi 0, %s216
      %s218 = sphi 0, %s216
      %s219 = sphi 0, %s218
      %s233 = sphi 0, %s219
      %s237 = sphi 0, %s237
      %s239 = sphi 0, %s237
      %s240 = sphi 0, %s239
      %s254 = sphi 0, %s240
      %s258 = sphi 0, %s258
      %s260 = sphi 0, %s258
      %s261 = sphi 0, %s260
      %s275 = sphi 0, %s261
      %s279 = sphi 0, %s279
      %s281 = sphi 0, %s279
      %s282 = sphi 0, %s281
      %s296 = sphi 0, %s282
      %s300 = sphi 0, %s300
      %s302 = sphi 0, %s300
      %s303 = sphi 0, %s302
      %s317 = sphi 0, %s303
      %s321 = sphi 0, %s321
      %s323 = sphi 0, %s321
      %s324 = sphi 0, %s323
      %s338 = sphi 0, %s324
      %s342 = sphi 0, %s342
      %s344 = sphi 0, %s342
      %s345 = sphi 0, %s344
      %s359 = sphi 0, %s345
      %s363 = sphi 0, %s363
      %s365 = sphi 0, %s363
      %s366 = sphi 0, %s365
      %s380 = sphi 0, %s366
      %s386 = sphi 0, %s388
      %s389 = sphi 0, %s386
      %s390 = sphi 0, %s389
      %s406 = sphi 0, %s390
      %s412 = sphi 0, %s414
      %s415 = sphi 0, %s412
      %s416 = sphi 0, %s415
      %s432 = sphi 0, %s416
      %s438 = sphi 0, %s440
      %s441 = sphi 0, %s438
      %s442 = sphi 0, %s441
      %s458 = sphi 0, %s442
      %s464 = sphi 0, %s466
      %s467 = sphi 0, %s464
      %s468 = sphi 0, %s467
      %s484 = sphi 0, %s468
      %s490 = sphi 0, %s492
      %s493 = sphi 0, %s490
      %s494 = sphi 0, %s493
      %s510 = sphi 0, %s494
      %s516 = sphi 0, %s518
      %s519 = sphi 0, %s516
      %s520 = sphi 0, %s519
      %s536 = sphi 0, %s520
    $region4: #{tpu_custom_call.1} parent=1 // loop_header_branch
      %55 = sbr.rel (%p53) target = $region8
    $region5: #{tpu_custom_call.1} parent=1 // loop_body
      %s57 = ssub.s32 %s52, 1
      %s58 = ssub.s32 %s52, 2
      %s59 = sadd.s32 %s52, 1
      %s60 = ssub.s32 %s52, %s59
      %p61 = scmp.eq.s32.totalorder %s60, 0
      %s63 = sadd.s32 %s62, 1
      %s64 = scalar_select %p61, %s62, %s63
      %p67 = pneg %p61
      %p68 = scmp.eq.s32.totalorder %s52, 1
      %p69 = por %p67, %p68
      %p70 = scmp.ne.s32.totalorder %s62, %s65
      %p71 = scmp.eq.s32.totalorder %s52, 0
      %p72 = por %p70, %p71
      %p73 = scmp.ne.s32.totalorder %s62, %s65
      %p74 = scmp.eq.s32.totalorder %s57, 1
      %p75 = por %p73, %p74
      %p76 = scmp.ne.s32.totalorder %s65, %s66
      %p77 = scmp.eq.s32.totalorder %s57, 0
      %p78 = por %p76, %p77
      %p79 = scmp.ne.s32.totalorder %s65, %s66
      %p80 = scmp.eq.s32.totalorder %s58, 1
      %p81 = por %p79, %p80
      %p83 = scmp.ne.s32.totalorder %s66, %s82
      %p84 = scmp.eq.s32.totalorder %s58, 0
      %p85 = por %p83, %p84
      %s86 = ssub.s32 %s52, %s59
      %p87 = scmp.eq.s32.totalorder %s86, 0
      %s89 = sadd.s32 %s88, 1
      %s90 = scalar_select %p87, %s88, %s89
      %p93 = pneg %p87
      %p94 = scmp.eq.s32.totalorder %s52, 1
      %p95 = por %p93, %p94
      %p96 = scmp.ne.s32.totalorder %s88, %s91
      %p97 = scmp.eq.s32.totalorder %s52, 0
      %p98 = por %p96, %p97
      %p99 = scmp.ne.s32.totalorder %s88, %s91
      %p100 = scmp.eq.s32.totalorder %s57, 1
      %p101 = por %p99, %p100
      %p102 = scmp.ne.s32.totalorder %s91, %s92
      %p103 = scmp.eq.s32.totalorder %s57, 0
      %p104 = por %p102, %p103
      %p105 = scmp.ne.s32.totalorder %s91, %s92
      %p106 = scmp.eq.s32.totalorder %s58, 1
      %p107 = por %p105, %p106
      %p109 = scmp.ne.s32.totalorder %s92, %s108
      %p110 = scmp.eq.s32.totalorder %s58, 0
      %p111 = por %p109, %p110
      %s112 = ssub.s32 %s52, %s59
      %p113 = scmp.eq.s32.totalorder %s112, 0
      %s115 = sadd.s32 %s114, 1
      %s116 = scalar_select %p113, %s114, %s115
      %p119 = pneg %p113
      %p120 = scmp.eq.s32.totalorder %s52, 1
      %p121 = por %p119, %p120
      %p122 = scmp.ne.s32.totalorder %s114, %s117
      %p123 = scmp.eq.s32.totalorder %s52, 0
      %p124 = por %p122, %p123
      %p125 = scmp.ne.s32.totalorder %s114, %s117
      %p126 = scmp.eq.s32.totalorder %s57, 1
      %p127 = por %p125, %p126
      %p128 = scmp.ne.s32.totalorder %s117, %s118
      %p129 = scmp.eq.s32.totalorder %s57, 0
      %p130 = por %p128, %p129
      %p131 = scmp.ne.s32.totalorder %s117, %s118
      %p132 = scmp.eq.s32.totalorder %s58, 1
      %p133 = por %p131, %p132
      %p135 = scmp.ne.s32.totalorder %s118, %s134
      %p136 = scmp.eq.s32.totalorder %s58, 0
      %p137 = por %p135, %p136
      %s138 = ssub.s32 %s52, %s59
      %p139 = scmp.eq.s32.totalorder %s138, 0
      %s141 = sadd.s32 %s140, 1
      %s142 = scalar_select %p139, %s140, %s141
      %p145 = pneg %p139
      %p146 = scmp.eq.s32.totalorder %s52, 1
      %p147 = por %p145, %p146
      %p148 = scmp.ne.s32.totalorder %s140, %s143
      %p149 = scmp.eq.s32.totalorder %s52, 0
      %p150 = por %p148, %p149
      %p151 = scmp.ne.s32.totalorder %s140, %s143
      %p152 = scmp.eq.s32.totalorder %s57, 1
      %p153 = por %p151, %p152
      %p154 = scmp.ne.s32.totalorder %s143, %s144
      %p155 = scmp.eq.s32.totalorder %s57, 0
      %p156 = por %p154, %p155
      %p157 = scmp.ne.s32.totalorder %s143, %s144
      %p158 = scmp.eq.s32.totalorder %s58, 1
      %p159 = por %p157, %p158
      %p161 = scmp.ne.s32.totalorder %s144, %s160
      %p162 = scmp.eq.s32.totalorder %s58, 0
      %p163 = por %p161, %p162
      %s164 = ssub.s32 %s52, %s59
      %p165 = scmp.eq.s32.totalorder %s164, 0
      %s167 = sadd.s32 %s166, 1
      %s168 = scalar_select %p165, %s166, %s167
      %p171 = pneg %p165
      %p172 = scmp.eq.s32.totalorder %s52, 1
      %p173 = por %p171, %p172
      %p174 = scmp.ne.s32.totalorder %s166, %s169
      %p175 = scmp.eq.s32.totalorder %s52, 0
      %p176 = por %p174, %p175
      %p177 = scmp.ne.s32.totalorder %s166, %s169
      %p178 = scmp.eq.s32.totalorder %s57, 1
      %p179 = por %p177, %p178
      %p180 = scmp.ne.s32.totalorder %s169, %s170
      %p181 = scmp.eq.s32.totalorder %s57, 0
      %p182 = por %p180, %p181
      %p183 = scmp.ne.s32.totalorder %s169, %s170
      %p184 = scmp.eq.s32.totalorder %s58, 1
      %p185 = por %p183, %p184
      %p187 = scmp.ne.s32.totalorder %s170, %s186
      %p188 = scmp.eq.s32.totalorder %s58, 0
      %p189 = por %p187, %p188
      %s190 = ssub.s32 %s52, %s59
      %p191 = scmp.eq.s32.totalorder %s190, 0
      %s193 = sadd.s32 %s192, 1
      %s194 = scalar_select %p191, %s192, %s193
      %p197 = pneg %p191
      %p198 = scmp.eq.s32.totalorder %s52, 1
      %p199 = por %p197, %p198
      %p200 = scmp.ne.s32.totalorder %s192, %s195
      %p201 = scmp.eq.s32.totalorder %s52, 0
      %p202 = por %p200, %p201
      %p203 = scmp.ne.s32.totalorder %s192, %s195
      %p204 = scmp.eq.s32.totalorder %s57, 1
      %p205 = por %p203, %p204
      %p206 = scmp.ne.s32.totalorder %s195, %s196
      %p207 = scmp.eq.s32.totalorder %s57, 0
      %p208 = por %p206, %p207
      %p209 = scmp.ne.s32.totalorder %s195, %s196
      %p210 = scmp.eq.s32.totalorder %s58, 1
      %p211 = por %p209, %p210
      %p213 = scmp.ne.s32.totalorder %s196, %s212
      %p214 = scmp.eq.s32.totalorder %s58, 0
      %p215 = por %p213, %p214
      %s217 = sadd.s32 %s216, 1
      %p220 = scmp.eq.s32.totalorder %s52, 1
      %p221 = scmp.ne.s32.totalorder %s216, %s218
      %p222 = scmp.eq.s32.totalorder %s52, 0
      %p223 = por %p221, %p222
      %p224 = scmp.ne.s32.totalorder %s216, %s218
      %p225 = scmp.eq.s32.totalorder %s57, 1
      %p226 = por %p224, %p225
      %p227 = scmp.ne.s32.totalorder %s218, %s219
      %p228 = scmp.eq.s32.totalorder %s57, 0
      %p229 = por %p227, %p228
      %p230 = scmp.ne.s32.totalorder %s218, %s219
      %p231 = scmp.eq.s32.totalorder %s58, 1
      %p232 = por %p230, %p231
      %p234 = scmp.ne.s32.totalorder %s219, %s233
      %p235 = scmp.eq.s32.totalorder %s58, 0
      %p236 = por %p234, %p235
      %s238 = sadd.s32 %s237, 1
      %p241 = scmp.eq.s32.totalorder %s52, 1
      %p242 = scmp.ne.s32.totalorder %s237, %s239
      %p243 = scmp.eq.s32.totalorder %s52, 0
      %p244 = por %p242, %p243
      %p245 = scmp.ne.s32.totalorder %s237, %s239
      %p246 = scmp.eq.s32.totalorder %s57, 1
      %p247 = por %p245, %p246
      %p248 = scmp.ne.s32.totalorder %s239, %s240
      %p249 = scmp.eq.s32.totalorder %s57, 0
      %p250 = por %p248, %p249
      %p251 = scmp.ne.s32.totalorder %s239, %s240
      %p252 = scmp.eq.s32.totalorder %s58, 1
      %p253 = por %p251, %p252
      %p255 = scmp.ne.s32.totalorder %s240, %s254
      %p256 = scmp.eq.s32.totalorder %s58, 0
      %p257 = por %p255, %p256
      %s259 = sadd.s32 %s258, 1
      %p262 = scmp.eq.s32.totalorder %s52, 1
      %p263 = scmp.ne.s32.totalorder %s258, %s260
      %p264 = scmp.eq.s32.totalorder %s52, 0
      %p265 = por %p263, %p264
      %p266 = scmp.ne.s32.totalorder %s258, %s260
      %p267 = scmp.eq.s32.totalorder %s57, 1
      %p268 = por %p266, %p267
      %p269 = scmp.ne.s32.totalorder %s260, %s261
      %p270 = scmp.eq.s32.totalorder %s57, 0
      %p271 = por %p269, %p270
      %p272 = scmp.ne.s32.totalorder %s260, %s261
      %p273 = scmp.eq.s32.totalorder %s58, 1
      %p274 = por %p272, %p273
      %p276 = scmp.ne.s32.totalorder %s261, %s275
      %p277 = scmp.eq.s32.totalorder %s58, 0
      %p278 = por %p276, %p277
      %s280 = sadd.s32 %s279, 1
      %p283 = scmp.eq.s32.totalorder %s52, 1
      %p284 = scmp.ne.s32.totalorder %s279, %s281
      %p285 = scmp.eq.s32.totalorder %s52, 0
      %p286 = por %p284, %p285
      %p287 = scmp.ne.s32.totalorder %s279, %s281
      %p288 = scmp.eq.s32.totalorder %s57, 1
      %p289 = por %p287, %p288
      %p290 = scmp.ne.s32.totalorder %s281, %s282
      %p291 = scmp.eq.s32.totalorder %s57, 0
      %p292 = por %p290, %p291
      %p293 = scmp.ne.s32.totalorder %s281, %s282
      %p294 = scmp.eq.s32.totalorder %s58, 1
      %p295 = por %p293, %p294
      %p297 = scmp.ne.s32.totalorder %s282, %s296
      %p298 = scmp.eq.s32.totalorder %s58, 0
      %p299 = por %p297, %p298
      %s301 = sadd.s32 %s300, 1
      %p304 = scmp.eq.s32.totalorder %s52, 1
      %p305 = scmp.ne.s32.totalorder %s300, %s302
      %p306 = scmp.eq.s32.totalorder %s52, 0
      %p307 = por %p305, %p306
      %p308 = scmp.ne.s32.totalorder %s300, %s302
      %p309 = scmp.eq.s32.totalorder %s57, 1
      %p310 = por %p308, %p309
      %p311 = scmp.ne.s32.totalorder %s302, %s303
      %p312 = scmp.eq.s32.totalorder %s57, 0
      %p313 = por %p311, %p312
      %p314 = scmp.ne.s32.totalorder %s302, %s303
      %p315 = scmp.eq.s32.totalorder %s58, 1
      %p316 = por %p314, %p315
      %p318 = scmp.ne.s32.totalorder %s303, %s317
      %p319 = scmp.eq.s32.totalorder %s58, 0
      %p320 = por %p318, %p319
      %s322 = sadd.s32 %s321, 1
      %p325 = scmp.eq.s32.totalorder %s52, 1
      %p326 = scmp.ne.s32.totalorder %s321, %s323
      %p327 = scmp.eq.s32.totalorder %s52, 0
      %p328 = por %p326, %p327
      %p329 = scmp.ne.s32.totalorder %s321, %s323
      %p330 = scmp.eq.s32.totalorder %s57, 1
      %p331 = por %p329, %p330
      %p332 = scmp.ne.s32.totalorder %s323, %s324
      %p333 = scmp.eq.s32.totalorder %s57, 0
      %p334 = por %p332, %p333
      %p335 = scmp.ne.s32.totalorder %s323, %s324
      %p336 = scmp.eq.s32.totalorder %s58, 1
      %p337 = por %p335, %p336
      %p339 = scmp.ne.s32.totalorder %s324, %s338
      %p340 = scmp.eq.s32.totalorder %s58, 0
      %p341 = por %p339, %p340
      %s343 = sadd.s32 %s342, 1
      %p346 = scmp.eq.s32.totalorder %s52, 1
      %p347 = scmp.ne.s32.totalorder %s342, %s344
      %p348 = scmp.eq.s32.totalorder %s52, 0
      %p349 = por %p347, %p348
      %p350 = scmp.ne.s32.totalorder %s342, %s344
      %p351 = scmp.eq.s32.totalorder %s57, 1
      %p352 = por %p350, %p351
      %p353 = scmp.ne.s32.totalorder %s344, %s345
      %p354 = scmp.eq.s32.totalorder %s57, 0
      %p355 = por %p353, %p354
      %p356 = scmp.ne.s32.totalorder %s344, %s345
      %p357 = scmp.eq.s32.totalorder %s58, 1
      %p358 = por %p356, %p357
      %p360 = scmp.ne.s32.totalorder %s345, %s359
      %p361 = scmp.eq.s32.totalorder %s58, 0
      %p362 = por %p360, %p361
      %s364 = sadd.s32 %s363, 1
      %p367 = scmp.eq.s32.totalorder %s52, 1
      %p368 = scmp.ne.s32.totalorder %s363, %s365
      %p369 = scmp.eq.s32.totalorder %s52, 0
      %p370 = por %p368, %p369
      %p371 = scmp.ne.s32.totalorder %s363, %s365
      %p372 = scmp.eq.s32.totalorder %s57, 1
      %p373 = por %p371, %p372
      %p374 = scmp.ne.s32.totalorder %s365, %s366
      %p375 = scmp.eq.s32.totalorder %s57, 0
      %p376 = por %p374, %p375
      %p377 = scmp.ne.s32.totalorder %s365, %s366
      %p378 = scmp.eq.s32.totalorder %s58, 1
      %p379 = por %p377, %p378
      %p381 = scmp.ne.s32.totalorder %s366, %s380
      %p382 = scmp.eq.s32.totalorder %s58, 0
      %p383 = por %p381, %p382
      %s384 = ssub.s32 %s52, %s59
      %p385 = scmp.eq.s32.totalorder %s384, 0
      %s387 = sadd.s32 %s386, 1
      %s388 = scalar_select %p385, %s386, %s387
      %p391 = pneg %p385
      %p392 = scmp.eq.s32.totalorder %s52, 1
      %p393 = por %p391, %p392
      %p394 = scmp.ne.s32.totalorder %s386, %s389
      %p395 = scmp.eq.s32.totalorder %s52, 0
      %p396 = por %p394, %p395
      %p397 = scmp.ne.s32.totalorder %s386, %s389
      %p398 = scmp.eq.s32.totalorder %s57, 1
      %p399 = por %p397, %p398
      %p400 = scmp.ne.s32.totalorder %s389, %s390
      %p401 = scmp.eq.s32.totalorder %s57, 0
      %p402 = por %p400, %p401
      %p403 = scmp.ne.s32.totalorder %s389, %s390
      %p404 = scmp.eq.s32.totalorder %s58, 1
      %p405 = por %p403, %p404
      %p407 = scmp.ne.s32.totalorder %s390, %s406
      %p408 = scmp.eq.s32.totalorder %s58, 0
      %p409 = por %p407, %p408
      %s410 = ssub.s32 %s52, %s59
      %p411 = scmp.eq.s32.totalorder %s410, 0
      %s413 = sadd.s32 %s412, 1
      %s414 = scalar_select %p411, %s412, %s413
      %p417 = pneg %p411
      %p418 = scmp.eq.s32.totalorder %s52, 1
      %p419 = por %p417, %p418
      %p420 = scmp.ne.s32.totalorder %s412, %s415
      %p421 = scmp.eq.s32.totalorder %s52, 0
      %p422 = por %p420, %p421
      %p423 = scmp.ne.s32.totalorder %s412, %s415
      %p424 = scmp.eq.s32.totalorder %s57, 1
      %p425 = por %p423, %p424
      %p426 = scmp.ne.s32.totalorder %s415, %s416
      %p427 = scmp.eq.s32.totalorder %s57, 0
      %p428 = por %p426, %p427
      %p429 = scmp.ne.s32.totalorder %s415, %s416
      %p430 = scmp.eq.s32.totalorder %s58, 1
      %p431 = por %p429, %p430
      %p433 = scmp.ne.s32.totalorder %s416, %s432
      %p434 = scmp.eq.s32.totalorder %s58, 0
      %p435 = por %p433, %p434
      %s436 = ssub.s32 %s52, %s59
      %p437 = scmp.eq.s32.totalorder %s436, 0
      %s439 = sadd.s32 %s438, 1
      %s440 = scalar_select %p437, %s438, %s439
      %p443 = pneg %p437
      %p444 = scmp.eq.s32.totalorder %s52, 1
      %p445 = por %p443, %p444
      %p446 = scmp.ne.s32.totalorder %s438, %s441
      %p447 = scmp.eq.s32.totalorder %s52, 0
      %p448 = por %p446, %p447
      %p449 = scmp.ne.s32.totalorder %s438, %s441
      %p450 = scmp.eq.s32.totalorder %s57, 1
      %p451 = por %p449, %p450
      %p452 = scmp.ne.s32.totalorder %s441, %s442
      %p453 = scmp.eq.s32.totalorder %s57, 0
      %p454 = por %p452, %p453
      %p455 = scmp.ne.s32.totalorder %s441, %s442
      %p456 = scmp.eq.s32.totalorder %s58, 1
      %p457 = por %p455, %p456
      %p459 = scmp.ne.s32.totalorder %s442, %s458
      %p460 = scmp.eq.s32.totalorder %s58, 0
      %p461 = por %p459, %p460
      %s462 = ssub.s32 %s52, %s59
      %p463 = scmp.eq.s32.totalorder %s462, 0
      %s465 = sadd.s32 %s464, 1
      %s466 = scalar_select %p463, %s464, %s465
      %p469 = pneg %p463
      %p470 = scmp.eq.s32.totalorder %s52, 1
      %p471 = por %p469, %p470
      %p472 = scmp.ne.s32.totalorder %s464, %s467
      %p473 = scmp.eq.s32.totalorder %s52, 0
      %p474 = por %p472, %p473
      %p475 = scmp.ne.s32.totalorder %s464, %s467
      %p476 = scmp.eq.s32.totalorder %s57, 1
      %p477 = por %p475, %p476
      %p478 = scmp.ne.s32.totalorder %s467, %s468
      %p479 = scmp.eq.s32.totalorder %s57, 0
      %p480 = por %p478, %p479
      %p481 = scmp.ne.s32.totalorder %s467, %s468
      %p482 = scmp.eq.s32.totalorder %s58, 1
      %p483 = por %p481, %p482
      %p485 = scmp.ne.s32.totalorder %s468, %s484
      %p486 = scmp.eq.s32.totalorder %s58, 0
      %p487 = por %p485, %p486
      %s488 = ssub.s32 %s52, %s59
      %p489 = scmp.eq.s32.totalorder %s488, 0
      %s491 = sadd.s32 %s490, 1
      %s492 = scalar_select %p489, %s490, %s491
      %p495 = pneg %p489
      %p496 = scmp.eq.s32.totalorder %s52, 1
      %p497 = por %p495, %p496
      %p498 = scmp.ne.s32.totalorder %s490, %s493
      %p499 = scmp.eq.s32.totalorder %s52, 0
      %p500 = por %p498, %p499
      %p501 = scmp.ne.s32.totalorder %s490, %s493
      %p502 = scmp.eq.s32.totalorder %s57, 1
      %p503 = por %p501, %p502
      %p504 = scmp.ne.s32.totalorder %s493, %s494
      %p505 = scmp.eq.s32.totalorder %s57, 0
      %p506 = por %p504, %p505
      %p507 = scmp.ne.s32.totalorder %s493, %s494
      %p508 = scmp.eq.s32.totalorder %s58, 1
      %p509 = por %p507, %p508
      %p511 = scmp.ne.s32.totalorder %s494, %s510
      %p512 = scmp.eq.s32.totalorder %s58, 0
      %p513 = por %p511, %p512
      %s514 = ssub.s32 %s52, %s59
      %p515 = scmp.eq.s32.totalorder %s514, 0
      %s517 = sadd.s32 %s516, 1
      %s518 = scalar_select %p515, %s516, %s517
      %p521 = pneg %p515
      %p522 = scmp.eq.s32.totalorder %s52, 1
      %p523 = por %p521, %p522
      %p524 = scmp.ne.s32.totalorder %s516, %s519
      %p525 = scmp.eq.s32.totalorder %s52, 0
      %p526 = por %p524, %p525
      %p527 = scmp.ne.s32.totalorder %s516, %s519
      %p528 = scmp.eq.s32.totalorder %s57, 1
      %p529 = por %p527, %p528
      %p530 = scmp.ne.s32.totalorder %s519, %s520
      %p531 = scmp.eq.s32.totalorder %s57, 0
      %p532 = por %p530, %p531
      %p533 = scmp.ne.s32.totalorder %s519, %s520
      %p534 = scmp.eq.s32.totalorder %s58, 1
      %p535 = por %p533, %p534
      %p537 = scmp.ne.s32.totalorder %s520, %s536
      %p538 = scmp.eq.s32.totalorder %s58, 0
      %p539 = por %p537, %p538
      %p540 = scmp.le.s32.totalorder 1, %s52
      %p541 = scmp.lt.s32.totalorder %s52, 3
      %p542 = pnand %p540, %p541
      %p543 = pneg %p542
      // Predicated region
      $region9: #{tpu_custom_call.1} parent=5 // pred_check
        _
      $region10: #{tpu_custom_call.1} parent=5 // pred_check_branch
        %545 = sbr.rel (%p542) target = $region12
      $region11: #{tpu_custom_call.1} parent=5 // pred_region
        %s546 = ssub.s32 %s52, 1
        // Predicated region
        $region13: #{tpu_custom_call.1} parent=11 // pred_check
          %p547 = pneg %p229
        $region14: #{tpu_custom_call.1} parent=11 // pred_check_branch
          %549 = sbr.rel (%p547) target = $region16
        $region15: #{tpu_custom_call.1} parent=11 // pred_region
          %551 = vsyncadd [#allocation12], 0
          %s552 = sshll.u32 %s6, 4
          %s553 = int_to_ptr.hbm [resolvable:$true] %s552
          %s554 = sshll.u32 [#allocation13], 4
          %s555 = int_to_ptr.vmem [resolvable:$true] %s554
          %560 = dma.hbm_to_vmem [thread:$0]  %s553, 256, %s555, [#allocation12], 64, 64, 4
        $region16: #{tpu_custom_call.1} parent=11 // pred_fallthru
          _
        // Predicated region
        $region17: #{tpu_custom_call.1} parent=11 // pred_check
          %p561 = pneg %p250
        $region18: #{tpu_custom_call.1} parent=11 // pred_check_branch
          %563 = sbr.rel (%p561) target = $region20
        $region19: #{tpu_custom_call.1} parent=11 // pred_region
          %565 = vsyncadd [#allocation15], 0
          %s566 = sshll.u32 %s7, 4
          %s567 = int_to_ptr.hbm [resolvable:$true] %s566
          %s568 = sshll.u32 [#allocation14], 4
          %s569 = int_to_ptr.vmem [resolvable:$true] %s568
          %574 = dma.hbm_to_vmem [thread:$0]  %s567, 256, %s569, [#allocation15], 64, 64, 4
        $region20: #{tpu_custom_call.1} parent=11 // pred_fallthru
          _
        // Predicated region
        $region21: #{tpu_custom_call.1} parent=11 // pred_check
          %p575 = pneg %p271
        $region22: #{tpu_custom_call.1} parent=11 // pred_check_branch
          %577 = sbr.rel (%p575) target = $region24
        $region23: #{tpu_custom_call.1} parent=11 // pred_region
          %579 = vsyncadd [#allocation15], 0
          %s580 = sshll.u32 %s8, 4
          %s581 = int_to_ptr.hbm [resolvable:$true] %s580
          %s582 = sshll.u32 [#allocation16], 4
          %s583 = int_to_ptr.vmem [resolvable:$true] %s582
          %588 = dma.hbm_to_vmem [thread:$0]  %s581, 256, %s583, [#allocation15], 64, 64, 4
        $region24: #{tpu_custom_call.1} parent=11 // pred_fallthru
          _
        // Predicated region
        $region25: #{tpu_custom_call.1} parent=11 // pred_check
          %p589 = pneg %p292
        $region26: #{tpu_custom_call.1} parent=11 // pred_check_branch
          %591 = sbr.rel (%p589) target = $region28
        $region27: #{tpu_custom_call.1} parent=11 // pred_region
          %593 = vsyncadd [#allocation18], 0
          %s594 = sshll.u32 %s9, 4
          %s595 = int_to_ptr.hbm [resolvable:$true] %s594
          %s596 = sshll.u32 [#allocation17], 4
          %s597 = int_to_ptr.vmem [resolvable:$true] %s596
          %602 = dma.hbm_to_vmem [thread:$0]  %s595, 256, %s597, [#allocation18], 64, 64, 4
        $region28: #{tpu_custom_call.1} parent=11 // pred_fallthru
          _
        // Predicated region
        $region29: #{tpu_custom_call.1} parent=11 // pred_check
          %p603 = pneg %p313
        $region30: #{tpu_custom_call.1} parent=11 // pred_check_branch
          %605 = sbr.rel (%p603) target = $region32
        $region31: #{tpu_custom_call.1} parent=11 // pred_region
          _
        $region32: #{tpu_custom_call.1} parent=11 // pred_fallthru
          _
        // Predicated region
        $region33: #{tpu_custom_call.1} parent=11 // pred_check
          %p606 = pneg %p334
        $region34: #{tpu_custom_call.1} parent=11 // pred_check_branch
          %608 = sbr.rel (%p606) target = $region36
        $region35: #{tpu_custom_call.1} parent=11 // pred_region
          _
        $region36: #{tpu_custom_call.1} parent=11 // pred_fallthru
          _
        // Predicated region
        $region37: #{tpu_custom_call.1} parent=11 // pred_check
          %p609 = pneg %p355
        $region38: #{tpu_custom_call.1} parent=11 // pred_check_branch
          %611 = sbr.rel (%p609) target = $region40
        $region39: #{tpu_custom_call.1} parent=11 // pred_region
          %613 = vsyncadd [#allocation18], 0
          %s614 = sshll.u32 %s12, 4
          %s615 = int_to_ptr.hbm [resolvable:$true] %s614
          %s616 = sshll.u32 [#allocation19], 4
          %s617 = int_to_ptr.vmem [resolvable:$true] %s616
          %622 = dma.hbm_to_vmem [thread:$0]  %s615, 128, %s617, [#allocation18], 64, 64, 4
        $region40: #{tpu_custom_call.1} parent=11 // pred_fallthru
          _
        // Predicated region
        $region41: #{tpu_custom_call.1} parent=11 // pred_check
          %p623 = pneg %p376
        $region42: #{tpu_custom_call.1} parent=11 // pred_check_branch
          %625 = sbr.rel (%p623) target = $region44
        $region43: #{tpu_custom_call.1} parent=11 // pred_region
          _
        $region44: #{tpu_custom_call.1} parent=11 // pred_fallthru
          _
      $region12: #{tpu_custom_call.1} parent=5 // pred_fallthru
        _
      %p626 = scmp.lt.s32.totalorder %s52, 2
      // Predicated region
      $region45: #{tpu_custom_call.1} parent=5 // pred_check
        %p627 = pneg %p626
      $region46: #{tpu_custom_call.1} parent=5 // pred_check_branch
        %629 = sbr.rel (%p627) target = $region48
      $region47: #{tpu_custom_call.1} parent=5 // pred_region
        // Predicated region
        $region49: #{tpu_custom_call.1} parent=47 // pred_check
          %p630 = pneg %p72
        $region50: #{tpu_custom_call.1} parent=47 // pred_check_branch
          %632 = sbr.rel (%p630) target = $region52
        $region51: #{tpu_custom_call.1} parent=47 // pred_region
          %s633 = sand.u32 %s62, 1
          %s634 = scalar_lea.sflag [#allocation3], %s633
          %s635 = sand.u32 %s62, 1
          %s636 = smul.addr %s635, 8
          %s637 = scalar_lea.vmem [#allocation2], %s636
          %639 = vsyncadd %s634, 0
          %s640 = smul.addr %s52, 8
          %s641 = scalar_lea.hbm %s0, %s640
          %s643 = sshll.u32 %s641, 4
          %s644 = int_to_ptr.hbm [resolvable:$true] %s643
          %s645 = sshll.u32 %s637, 4
          %s646 = int_to_ptr.vmem [resolvable:$true] %s645
          %648 = dma.hbm_to_vmem [thread:$0]  %s644, 128, %s646, %s634
        $region52: #{tpu_custom_call.1} parent=47 // pred_fallthru
          _
        // Predicated region
        $region53: #{tpu_custom_call.1} parent=47 // pred_check
          %p649 = pneg %p98
        $region54: #{tpu_custom_call.1} parent=47 // pred_check_branch
          %651 = sbr.rel (%p649) target = $region56
        $region55: #{tpu_custom_call.1} parent=47 // pred_region
          %s652 = sand.u32 %s52, 1
          %s653 = scalar_lea.sflag [#allocation6], %s652
          %s654 = sand.u32 %s88, 1
          %s655 = smul.addr %s654, 8
          %s656 = scalar_lea.vmem [#allocation5], %s655
          %658 = vsyncadd %s653, 0
          %s659 = smul.addr %s52, 8
          %s660 = scalar_lea.hbm %s1, %s659
          %s662 = sshll.u32 %s660, 4
          %s663 = int_to_ptr.hbm [resolvable:$true] %s662
          %s664 = sshll.u32 %s656, 4
          %s665 = int_to_ptr.vmem [resolvable:$true] %s664
          %667 = dma.hbm_to_vmem [thread:$0]  %s663, 128, %s665, %s653
        $region56: #{tpu_custom_call.1} parent=47 // pred_fallthru
          _
        // Predicated region
        $region57: #{tpu_custom_call.1} parent=47 // pred_check
          %p668 = pneg %p124
        $region58: #{tpu_custom_call.1} parent=47 // pred_check_branch
          %670 = sbr.rel (%p668) target = $region60
        $region59: #{tpu_custom_call.1} parent=47 // pred_region
          %s671 = sand.u32 %s52, 1
          %s672 = scalar_lea.sflag [#allocation6], %s671
          %s673 = sand.u32 %s114, 1
          %s674 = smul.addr %s673, 8
          %s675 = scalar_lea.vmem [#allocation7], %s674
          %677 = vsyncadd %s672, 0
          %s678 = smul.addr %s52, 8
          %s679 = scalar_lea.hbm %s2, %s678
          %s681 = sshll.u32 %s679, 4
          %s682 = int_to_ptr.hbm [resolvable:$true] %s681
          %s683 = sshll.u32 %s675, 4
          %s684 = int_to_ptr.vmem [resolvable:$true] %s683
          %686 = dma.hbm_to_vmem [thread:$0]  %s682, 128, %s684, %s672
        $region60: #{tpu_custom_call.1} parent=47 // pred_fallthru
          _
        // Predicated region
        $region61: #{tpu_custom_call.1} parent=47 // pred_check
          %p687 = pneg %p150
        $region62: #{tpu_custom_call.1} parent=47 // pred_check_branch
          %689 = sbr.rel (%p687) target = $region64
        $region63: #{tpu_custom_call.1} parent=47 // pred_region
          %s690 = sand.u32 %s52, 1
          %s691 = scalar_lea.sflag [#allocation9], %s690
          %s692 = sand.u32 %s140, 1
          %s693 = smul.addr %s692, 8
          %s694 = scalar_lea.vmem [#allocation8], %s693
          %696 = vsyncadd %s691, 0
          %s697 = smul.addr %s52, 8
          %s698 = scalar_lea.hbm %s3, %s697
          %s700 = sshll.u32 %s698, 4
          %s701 = int_to_ptr.hbm [resolvable:$true] %s700
          %s702 = sshll.u32 %s694, 4
          %s703 = int_to_ptr.vmem [resolvable:$true] %s702
          %705 = dma.hbm_to_vmem [thread:$0]  %s701, 128, %s703, %s691
        $region64: #{tpu_custom_call.1} parent=47 // pred_fallthru
          _
        // Predicated region
        $region65: #{tpu_custom_call.1} parent=47 // pred_check
          %p706 = pneg %p176
        $region66: #{tpu_custom_call.1} parent=47 // pred_check_branch
          %708 = sbr.rel (%p706) target = $region68
        $region67: #{tpu_custom_call.1} parent=47 // pred_region
          %s709 = sand.u32 %s52, 1
          %s710 = scalar_lea.sflag [#allocation9], %s709
          %s711 = sand.u32 %s166, 1
          %s712 = smul.addr %s711, 8
          %s713 = scalar_lea.vmem [#allocation10], %s712
          %715 = vsyncadd %s710, 0
          %s716 = smul.addr %s52, 8
          %s717 = scalar_lea.hbm %s4, %s716
          %s719 = sshll.u32 %s717, 4
          %s720 = int_to_ptr.hbm [resolvable:$true] %s719
          %s721 = sshll.u32 %s713, 4
          %s722 = int_to_ptr.vmem [resolvable:$true] %s721
          %724 = dma.hbm_to_vmem [thread:$0]  %s720, 128, %s722, %s710
        $region68: #{tpu_custom_call.1} parent=47 // pred_fallthru
          _
        // Predicated region
        $region69: #{tpu_custom_call.1} parent=47 // pred_check
          %p725 = pneg %p202
        $region70: #{tpu_custom_call.1} parent=47 // pred_check_branch
          %727 = sbr.rel (%p725) target = $region72
        $region71: #{tpu_custom_call.1} parent=47 // pred_region
          %s728 = sand.u32 %s52, 1
          %s729 = scalar_lea.sflag [#allocation12], %s728
          %s730 = sand.u32 %s192, 1
          %s731 = smul.addr %s730, 8
          %s732 = scalar_lea.vmem [#allocation11], %s731
          %734 = vsyncadd %s729, 0
          %s735 = smul.addr %s52, 8
          %s736 = scalar_lea.hbm %s5, %s735
          %s738 = sshll.u32 %s736, 4
          %s739 = int_to_ptr.hbm [resolvable:$true] %s738
          %s740 = sshll.u32 %s732, 4
          %s741 = int_to_ptr.vmem [resolvable:$true] %s740
          %743 = dma.hbm_to_vmem [thread:$0]  %s739, 128, %s741, %s729
        $region72: #{tpu_custom_call.1} parent=47 // pred_fallthru
          _
      $region48: #{tpu_custom_call.1} parent=5 // pred_fallthru
        _
      %p744 = scmp.le.s32.totalorder 1, %s52
      %p745 = scmp.lt.s32.totalorder %s52, 3
      %p746 = pnand %p744, %p745
      %p747 = pneg %p746
      // Predicated region
      $region73: #{tpu_custom_call.1} parent=5 // pred_check
        _
      $region74: #{tpu_custom_call.1} parent=5 // pred_check_branch
        %749 = sbr.rel (%p746) target = $region76
      $region75: #{tpu_custom_call.1} parent=5 // pred_region
        %s750 = ssub.s32 %s52, 1
        %s751 = sand.u32 %s65, 1
        %s752 = scalar_lea.sflag [#allocation3], %s751
        %s753 = sand.u32 %s65, 1
        %s754 = smul.addr %s753, 8
        %s755 = scalar_lea.vmem [#allocation2], %s754
        // Predicated region
        $region77: #{tpu_custom_call.1} parent=75 // pred_check
          %p756 = pneg %p78
        $region78: #{tpu_custom_call.1} parent=75 // pred_check_branch
          %758 = sbr.rel (%p756) target = $region80
        $region79: #{tpu_custom_call.1} parent=75 // pred_region
          %760 = dma.done %s752, 128
        $region80: #{tpu_custom_call.1} parent=75 // pred_fallthru
          _
        %s761 = sand.u32 %s57, 1
        %s762 = scalar_lea.sflag [#allocation6], %s761
        %s763 = sand.u32 %s91, 1
        %s764 = smul.addr %s763, 8
        %s765 = scalar_lea.vmem [#allocation5], %s764
        // Predicated region
        $region81: #{tpu_custom_call.1} parent=75 // pred_check
          %p766 = pneg %p104
        $region82: #{tpu_custom_call.1} parent=75 // pred_check_branch
          %768 = sbr.rel (%p766) target = $region84
        $region83: #{tpu_custom_call.1} parent=75 // pred_region
          %770 = dma.done %s762, 128
        $region84: #{tpu_custom_call.1} parent=75 // pred_fallthru
          _
        %s771 = sand.u32 %s57, 1
        %s772 = scalar_lea.sflag [#allocation6], %s771
        %s773 = sand.u32 %s117, 1
        %s774 = smul.addr %s773, 8
        %s775 = scalar_lea.vmem [#allocation7], %s774
        // Predicated region
        $region85: #{tpu_custom_call.1} parent=75 // pred_check
          %p776 = pneg %p130
        $region86: #{tpu_custom_call.1} parent=75 // pred_check_branch
          %778 = sbr.rel (%p776) target = $region88
        $region87: #{tpu_custom_call.1} parent=75 // pred_region
          %780 = dma.done %s772, 128
        $region88: #{tpu_custom_call.1} parent=75 // pred_fallthru
          _
        %s781 = sand.u32 %s57, 1
        %s782 = scalar_lea.sflag [#allocation9], %s781
        %s783 = sand.u32 %s143, 1
        %s784 = smul.addr %s783, 8
        %s785 = scalar_lea.vmem [#allocation8], %s784
        // Predicated region
        $region89: #{tpu_custom_call.1} parent=75 // pred_check
          %p786 = pneg %p156
        $region90: #{tpu_custom_call.1} parent=75 // pred_check_branch
          %788 = sbr.rel (%p786) target = $region92
        $region91: #{tpu_custom_call.1} parent=75 // pred_region
          %790 = dma.done %s782, 128
        $region92: #{tpu_custom_call.1} parent=75 // pred_fallthru
          _
        %s791 = sand.u32 %s57, 1
        %s792 = scalar_lea.sflag [#allocation9], %s791
        %s793 = sand.u32 %s169, 1
        %s794 = smul.addr %s793, 8
        %s795 = scalar_lea.vmem [#allocation10], %s794
        // Predicated region
        $region93: #{tpu_custom_call.1} parent=75 // pred_check
          %p796 = pneg %p182
        $region94: #{tpu_custom_call.1} parent=75 // pred_check_branch
          %798 = sbr.rel (%p796) target = $region96
        $region95: #{tpu_custom_call.1} parent=75 // pred_region
          %800 = dma.done %s792, 128
        $region96: #{tpu_custom_call.1} parent=75 // pred_fallthru
          _
        %s801 = sand.u32 %s57, 1
        %s802 = scalar_lea.sflag [#allocation12], %s801
        %s803 = sand.u32 %s195, 1
        %s804 = smul.addr %s803, 8
        %s805 = scalar_lea.vmem [#allocation11], %s804
        // Predicated region
        $region97: #{tpu_custom_call.1} parent=75 // pred_check
          %p806 = pneg %p208
        $region98: #{tpu_custom_call.1} parent=75 // pred_check_branch
          %808 = sbr.rel (%p806) target = $region100
        $region99: #{tpu_custom_call.1} parent=75 // pred_region
          %810 = dma.done %s802, 128
        $region100: #{tpu_custom_call.1} parent=75 // pred_fallthru
          _
        // Predicated region
        $region101: #{tpu_custom_call.1} parent=75 // pred_check
          %p811 = pneg %p229
        $region102: #{tpu_custom_call.1} parent=75 // pred_check_branch
          %813 = sbr.rel (%p811) target = $region104
        $region103: #{tpu_custom_call.1} parent=75 // pred_region
          %815 = dma.done [#allocation12], 256
        $region104: #{tpu_custom_call.1} parent=75 // pred_fallthru
          _
        // Predicated region
        $region105: #{tpu_custom_call.1} parent=75 // pred_check
          %p816 = pneg %p250
        $region106: #{tpu_custom_call.1} parent=75 // pred_check_branch
          %818 = sbr.rel (%p816) target = $region108
        $region107: #{tpu_custom_call.1} parent=75 // pred_region
          %820 = dma.done [#allocation15], 256
        $region108: #{tpu_custom_call.1} parent=75 // pred_fallthru
          _
        // Predicated region
        $region109: #{tpu_custom_call.1} parent=75 // pred_check
          %p821 = pneg %p271
        $region110: #{tpu_custom_call.1} parent=75 // pred_check_branch
          %823 = sbr.rel (%p821) target = $region112
        $region111: #{tpu_custom_call.1} parent=75 // pred_region
          %825 = dma.done [#allocation15], 256
        $region112: #{tpu_custom_call.1} parent=75 // pred_fallthru
          _
        // Predicated region
        $region113: #{tpu_custom_call.1} parent=75 // pred_check
          %p826 = pneg %p292
        $region114: #{tpu_custom_call.1} parent=75 // pred_check_branch
          %828 = sbr.rel (%p826) target = $region116
        $region115: #{tpu_custom_call.1} parent=75 // pred_region
          %830 = dma.done [#allocation18], 256
        $region116: #{tpu_custom_call.1} parent=75 // pred_fallthru
          _
        // Predicated region
        $region117: #{tpu_custom_call.1} parent=75 // pred_check
          %p831 = pneg %p355
        $region118: #{tpu_custom_call.1} parent=75 // pred_check_branch
          %833 = sbr.rel (%p831) target = $region120
        $region119: #{tpu_custom_call.1} parent=75 // pred_region
          %835 = dma.done [#allocation18], 128
        $region120: #{tpu_custom_call.1} parent=75 // pred_fallthru
          _
        %s836 = sand.u32 %s65, 1
        %s837 = scalar_lea.sflag [#allocation3], %s836
        %s838 = sand.u32 %s65, 1
        %s839 = smul.addr %s838, 8
        %s840 = scalar_lea.vmem [#allocation2], %s839
        %p841 = pneg %p78
        %p842 = pneg %p75
        %s843 = sand.u32 %s57, 1
        %s844 = scalar_lea.sflag [#allocation6], %s843
        %s845 = sand.u32 %s91, 1
        %s846 = smul.addr %s845, 8
        %s847 = scalar_lea.vmem [#allocation5], %s846
        %p848 = pneg %p104
        %p849 = pneg %p101
        %s850 = sand.u32 %s57, 1
        %s851 = scalar_lea.sflag [#allocation6], %s850
        %s852 = sand.u32 %s117, 1
        %s853 = smul.addr %s852, 8
        %s854 = scalar_lea.vmem [#allocation7], %s853
        %p855 = pneg %p130
        %p856 = pneg %p127
        %s857 = sand.u32 %s57, 1
        %s858 = scalar_lea.sflag [#allocation9], %s857
        %s859 = sand.u32 %s143, 1
        %s860 = smul.addr %s859, 8
        %s861 = scalar_lea.vmem [#allocation8], %s860
        %p862 = pneg %p156
        %p863 = pneg %p153
        %s864 = sand.u32 %s57, 1
        %s865 = scalar_lea.sflag [#allocation9], %s864
        %s866 = sand.u32 %s169, 1
        %s867 = smul.addr %s866, 8
        %s868 = scalar_lea.vmem [#allocation10], %s867
        %p869 = pneg %p182
        %p870 = pneg %p179
        %s871 = sand.u32 %s57, 1
        %s872 = scalar_lea.sflag [#allocation12], %s871
        %s873 = sand.u32 %s195, 1
        %s874 = smul.addr %s873, 8
        %s875 = scalar_lea.vmem [#allocation11], %s874
        %p876 = pneg %p208
        %p877 = pneg %p205
        %p878 = pneg %p229
        %p879 = pneg %p226
        %p880 = pneg %p250
        %p881 = pneg %p247
        %p882 = pneg %p271
        %p883 = pneg %p268
        %p884 = pneg %p292
        %p885 = pneg %p289
        %p886 = pneg %p313
        %p887 = pneg %p310
        %p888 = pneg %p334
        %p889 = pneg %p331
        %p890 = pneg %p355
        %p891 = pneg %p352
        %p892 = pneg %p376
        %p893 = pneg %p373
        %p894 = pneg %p402
        %p895 = pneg %p399
        %s896 = sand.u32 %s389, 1
        %s897 = scalar_lea.sflag [#allocation4], %s896
        %s898 = sand.u32 %s389, 1
        %s899 = smul.addr %s898, 8
        %s900 = scalar_lea.vmem [#allocation20], %s899
        %p901 = pneg %p428
        %p902 = pneg %p425
        %s903 = sand.u32 %s57, 1
        %s904 = scalar_lea.sflag [#allocation22], %s903
        %s905 = sand.u32 %s415, 1
        %s906 = smul.addr %s905, 8
        %s907 = scalar_lea.vmem [#allocation21], %s906
        %p908 = pneg %p454
        %p909 = pneg %p451
        %s910 = sand.u32 %s57, 1
        %s911 = scalar_lea.sflag [#allocation22], %s910
        %s912 = sand.u32 %s441, 1
        %s913 = smul.addr %s912, 8
        %s914 = scalar_lea.vmem [#allocation23], %s913
        %p915 = pneg %p480
        %p916 = pneg %p477
        %s917 = sand.u32 %s57, 1
        %s918 = scalar_lea.sflag [#allocation25], %s917
        %s919 = sand.u32 %s467, 1
        %s920 = smul.addr %s919, 8
        %s921 = scalar_lea.vmem [#allocation24], %s920
        %p922 = pneg %p506
        %p923 = pneg %p503
        %s924 = sand.u32 %s57, 1
        %s925 = scalar_lea.sflag [#allocation25], %s924
        %s926 = sand.u32 %s493, 1
        %s927 = smul.addr %s926, 8
        %s928 = scalar_lea.vmem [#allocation26], %s927
        %p929 = pneg %p532
        %p930 = pneg %p529
        %s931 = sand.u32 %s519, 1
        %s932 = scalar_lea.sflag [#allocation28], %s931
        %s933 = sand.u32 %s519, 1
        %s934 = smul.addr %s933, 8
        %s935 = scalar_lea.vmem [#allocation27], %s934
        %v937 = vld [vmem:[%s755] sm:$0xff]
        %v938 = vld [vmem:[%s765] sm:$0xff]
        %v939 = vpack.c.bf16 %v937, %v937
        %vm940 = vcmask 261120
        %v942 = vsel %vm940, %v939, 0
        %944 = vmatpush.bf16.xpose.msra.mxu0 0
        %945 = vmatpush.bf16.xpose.msra.mxu0 0
        %946 = vmatpush.bf16.xpose.msra.mxu0 0
        %947 = vmatpush.bf16.xpose.msra.mxu0 0
        %948 = vmatpush.bf16.xpose.msra.mxu0 0
        %949 = vmatpush.bf16.xpose.msra.mxu0 0
        %950 = vmatpush.bf16.xpose.msra.mxu0 0
        %951 = vmatpush.bf16.xpose.msra.mxu0 %v942
        %952 = vmatmul.bf16.gmra.mxu0 %v942
        %v953 = vpop.f32.mrf.mxu0
        %v954 = vadd.f32 0.0, %v953
        %v955 = vpop.f32.mrf.mxu0
        %956 = vdwg.mxu0
        %v957 = vmul.f32 %v954, 8.0
        %vm958 = vcmask 64512
        %v959 = vsel %vm958, %v957, -inf
        %960 = vmax.xlane.f32.xlu0 %v959
        %v961 = vpop.xlane.xlu0 %960
        %v962 = vsub.f32 %v957, %v961
        %v963 = vmul.f32 %v962, 1.442695
        %v964 = vpow.pop %v963
        %v965 = vsel %vm958, %v964, 0.0
        %966 = vadd.xlane.f32.xlu0 %v965
        %v967 = vpop.xlane.xlu0 %966
        %v968 = vrcp.pop %v967
        %v969 = vmul.f32 %v964, %v968
        %v970 = vpack.c.bf16 %v969, %v969
        %v972 = vsel %vm958, %v970, 0
        %vm974 = vcmask 1043456
        %v975 = vsel %vm974, %v939, 0
        %977 = vmatpush.bf16.msra.mxu0 0
        %978 = vmatpush.bf16.msra.mxu0 0
        %979 = vmatpush.bf16.msra.mxu0 0
        %980 = vmatpush.bf16.msra.mxu0 0
        %981 = vmatpush.bf16.msra.mxu0 0
        %982 = vmatpush.bf16.msra.mxu0 0
        %983 = vmatpush.bf16.msra.mxu0 0
        %984 = vmatpush.bf16.msra.mxu0 %v975
        %985 = vmatmul.bf16.gmra.mxu0 %v972
        %v986 = vpop.f32.mrf.mxu0
        %v987 = vadd.f32 0.0, %v986
        %v988 = vpop.f32.mrf.mxu0
        %989 = vdwg.mxu0
        %v990 = vld [vmem:[%s775] sm:$0xff]
        %v991 = vld [vmem:[#allocation13] sm:$0xf]
        %v992 = vld [vmem:[#allocation13 + $0x4] sm:$0xf]
        %v993 = vld [vmem:[#allocation13 + $0x8] sm:$0xf]
        %v994 = vld [vmem:[#allocation13 + $0xc] sm:$0xf]
        %v995 = vld [vmem:[#allocation14] sm:$0xf]
        %v996 = vld [vmem:[#allocation14 + $0x4] sm:$0xf]
        %v997 = vld [vmem:[#allocation14 + $0x8] sm:$0xf]
        %v998 = vld [vmem:[#allocation14 + $0xc] sm:$0xf]
        %v999 = vpack.c.bf16 %v990, %v990
        %v1000 = vpack.c.bf16 %v987, %v987
        %v1005 = vunpack.c.l.b16 %v991
        %v1006 = vunpack.c.l.b16 %v992
        %v1007 = vunpack.c.l.b16 %v993
        %v1008 = vunpack.c.l.b16 %v994
        %v1009 = vpack.c.b16 %v1006, %v1005
        %v1010 = vpack.c.b16 %v1008, %v1007
        %v1014 = vsel %vm940, %v1000, 0
        %1016 = vmatpush.bf16.msra.mxu0 0
        %1017 = vmatpush.bf16.msra.mxu0 0
        %1018 = vmatpush.bf16.msra.mxu0 0
        %1019 = vmatpush.bf16.msra.mxu0 0
        %1020 = vmatpush.bf16.msra.mxu0 0
        %1021 = vmatpush.bf16.msra.mxu0 0
        %1022 = vmatpush.bf16.msra.mxu0 %v1010
        %1023 = vmatpush.bf16.msra.mxu0 %v1009
        %1024 = vmatmul.bf16.gmra.mxu0 %v1014
        %v1025 = vpop.f32.mrf.mxu0
        %v1026 = vadd.f32 0.0, %v1025
        %v1027 = vpop.f32.mrf.mxu0
        %1028 = vdwg.mxu0
        %v1029 = vpack.c.bf16 %v1026, %v1026
        %v1031 = vsel %vm958, %v999, 0
        %v1034 = vsel %vm974, %v1029, 0
        %1036 = vmatpush.bf16.msra.mxu0 0
        %1037 = vmatpush.bf16.msra.mxu0 0
        %1038 = vmatpush.bf16.msra.mxu0 0
        %1039 = vmatpush.bf16.msra.mxu0 0
        %1040 = vmatpush.bf16.msra.mxu0 0
        %1041 = vmatpush.bf16.msra.mxu0 0
        %1042 = vmatpush.bf16.msra.mxu0 0
        %1043 = vmatpush.bf16.msra.mxu0 %v1034
        %1044 = vmatmul.bf16.gmra.mxu0 %v1031
        %v1045 = vpop.f32.mrf.mxu0
        %v1046 = vadd.f32 0.0, %v1045
        %v1047 = vpop.f32.mrf.mxu0
        %1048 = vdwg.mxu0
        %v1049 = vmax.f32 %v1046, 0.0
        %v1050 = vpack.c.bf16 %v1049, %v1049
        %v1055 = vunpack.c.l.b16 %v995
        %v1056 = vunpack.c.l.b16 %v996
        %v1057 = vunpack.c.l.b16 %v997
        %v1058 = vunpack.c.l.b16 %v998
        %v1059 = vpack.c.b16 %v1056, %v1055
        %v1060 = vpack.c.b16 %v1058, %v1057
        %v1064 = vsel %vm940, %v1050, 0
        %1066 = vmatpush.bf16.msra.mxu0 0
        %1067 = vmatpush.bf16.msra.mxu0 0
        %1068 = vmatpush.bf16.msra.mxu0 0
        %1069 = vmatpush.bf16.msra.mxu0 0
        %1070 = vmatpush.bf16.msra.mxu0 0
        %1071 = vmatpush.bf16.msra.mxu0 0
        %1072 = vmatpush.bf16.msra.mxu0 %v1060
        %1073 = vmatpush.bf16.msra.mxu0 %v1059
        %1074 = vmatmul.bf16.gmra.mxu0 %v1064
        %v1075 = vpop.f32.mrf.mxu0
        %v1076 = vadd.f32 0.0, %v1075
        %v1077 = vpop.f32.mrf.mxu0
        %1078 = vdwg.mxu0
        %v1079 = vpack.c.bf16 %v1076, %v1076
        %v1081 = vsel %vm974, %v1079, 0
        %1083 = vmatpush.bf16.msra.mxu0 0
        %1084 = vmatpush.bf16.msra.mxu0 0
        %1085 = vmatpush.bf16.msra.mxu0 0
        %1086 = vmatpush.bf16.msra.mxu0 0
        %1087 = vmatpush.bf16.msra.mxu0 0
        %1088 = vmatpush.bf16.msra.mxu0 0
        %1089 = vmatpush.bf16.msra.mxu0 0
        %1090 = vmatpush.bf16.msra.mxu0 %v1081
        %1091 = vmatmul.bf16.gmra.mxu0 %v1031
        %v1092 = vpop.f32.mrf.mxu0
        %v1093 = vadd.f32 0.0, %v1092
        %v1094 = vpop.f32.mrf.mxu0
        %1095 = vdwg.mxu0
        %v1096 = vld [vmem:[%s785] sm:$0xff]
        %v1097 = vld [vmem:[#allocation16] sm:$0xf]
        %v1098 = vld [vmem:[#allocation16 + $0x4] sm:$0xf]
        %v1099 = vld [vmem:[#allocation16 + $0x8] sm:$0xf]
        %v1100 = vld [vmem:[#allocation16 + $0xc] sm:$0xf]
        %v1101 = vld [vmem:[#allocation17] sm:$0xf]
        %v1102 = vld [vmem:[#allocation17 + $0x4] sm:$0xf]
        %v1103 = vld [vmem:[#allocation17 + $0x8] sm:$0xf]
        %v1104 = vld [vmem:[#allocation17 + $0xc] sm:$0xf]
        %v1105 = vpack.c.bf16 %v1096, %v1096
        %v1106 = vpack.c.bf16 %v938, %v938
        %v1111 = vunpack.c.l.b16 %v1097
        %v1112 = vunpack.c.l.b16 %v1098
        %v1113 = vunpack.c.l.b16 %v1099
        %v1114 = vunpack.c.l.b16 %v1100
        %v1115 = vpack.c.b16 %v1112, %v1111
        %v1116 = vpack.c.b16 %v1114, %v1113
        %v1120 = vsel %vm940, %v1106, 0
        %1122 = vmatpush.bf16.msra.mxu0 0
        %1123 = vmatpush.bf16.msra.mxu0 0
        %1124 = vmatpush.bf16.msra.mxu0 0
        %1125 = vmatpush.bf16.msra.mxu0 0
        %1126 = vmatpush.bf16.msra.mxu0 0
        %1127 = vmatpush.bf16.msra.mxu0 0
        %1128 = vmatpush.bf16.msra.mxu0 %v1116
        %1129 = vmatpush.bf16.msra.mxu0 %v1115
        %1130 = vmatmul.bf16.gmra.mxu0 %v1120
        %v1131 = vpop.f32.mrf.mxu0
        %v1132 = vadd.f32 0.0, %v1131
        %v1133 = vpop.f32.mrf.mxu0
        %1134 = vdwg.mxu0
        %v1135 = vpack.c.bf16 %v1132, %v1132
        %v1137 = vsel %vm958, %v1105, 0
        %v1140 = vsel %vm974, %v1135, 0
        %1142 = vmatpush.bf16.msra.mxu0 0
        %1143 = vmatpush.bf16.msra.mxu0 0
        %1144 = vmatpush.bf16.msra.mxu0 0
        %1145 = vmatpush.bf16.msra.mxu0 0
        %1146 = vmatpush.bf16.msra.mxu0 0
        %1147 = vmatpush.bf16.msra.mxu0 0
        %1148 = vmatpush.bf16.msra.mxu0 0
        %1149 = vmatpush.bf16.msra.mxu0 %v1140
        %1150 = vmatmul.bf16.gmra.mxu0 %v1137
        %v1151 = vpop.f32.mrf.mxu0
        %v1152 = vadd.f32 0.0, %v1151
        %v1153 = vpop.f32.mrf.mxu0
        %1154 = vdwg.mxu0
        %v1155 = vmax.f32 %v1152, 0.0
        %v1156 = vpack.c.bf16 %v1155, %v1155
        %v1161 = vunpack.c.l.b16 %v1101
        %v1162 = vunpack.c.l.b16 %v1102
        %v1163 = vunpack.c.l.b16 %v1103
        %v1164 = vunpack.c.l.b16 %v1104
        %v1165 = vpack.c.b16 %v1162, %v1161
        %v1166 = vpack.c.b16 %v1164, %v1163
        %v1170 = vsel %vm940, %v1156, 0
        %1172 = vmatpush.bf16.msra.mxu0 0
        %1173 = vmatpush.bf16.msra.mxu0 0
        %1174 = vmatpush.bf16.msra.mxu0 0
        %1175 = vmatpush.bf16.msra.mxu0 0
        %1176 = vmatpush.bf16.msra.mxu0 0
        %1177 = vmatpush.bf16.msra.mxu0 0
        %1178 = vmatpush.bf16.msra.mxu0 %v1166
        %1179 = vmatpush.bf16.msra.mxu0 %v1165
        %1180 = vmatmul.bf16.gmra.mxu0 %v1170
        %v1181 = vpop.f32.mrf.mxu0
        %v1182 = vadd.f32 0.0, %v1181
        %v1183 = vpop.f32.mrf.mxu0
        %1184 = vdwg.mxu0
        %v1185 = vpack.c.bf16 %v1182, %v1182
        %v1187 = vsel %vm974, %v1185, 0
        %1189 = vmatpush.bf16.msra.mxu0 0
        %1190 = vmatpush.bf16.msra.mxu0 0
        %1191 = vmatpush.bf16.msra.mxu0 0
        %1192 = vmatpush.bf16.msra.mxu0 0
        %1193 = vmatpush.bf16.msra.mxu0 0
        %1194 = vmatpush.bf16.msra.mxu0 0
        %1195 = vmatpush.bf16.msra.mxu0 0
        %1196 = vmatpush.bf16.msra.mxu0 %v1187
        %1197 = vmatmul.bf16.gmra.mxu0 %v1137
        %v1198 = vpop.f32.mrf.mxu0
        %v1199 = vadd.f32 0.0, %v1198
        %v1200 = vpop.f32.mrf.mxu0
        %1201 = vdwg.mxu0
        %vm1202 = vcmask 130048
        %1203 = vst.msk [vmem:[%s900] sm:$0xff] %vm1202, %v1093
        %1205 = vrot.lane.b32.xlu0 %v1093, 112
        %v1206 = vpop.permute.xlu0 %1205
        %1208 = vst.msk [vmem:[%s907] sm:$0xff] %vm1202, %v1206
        %1209 = vst.msk [vmem:[%s921] sm:$0xff] %vm1202, %v1199
        %1211 = vrot.lane.b32.xlu0 %v1199, 112
        %v1212 = vpop.permute.xlu0 %1211
        %1214 = vst.msk [vmem:[%s928] sm:$0xff] %vm1202, %v1212
        %v1215 = vmul.f32 %v1093, 1.442695
        %v1216 = vpow.pop %v1215
        %v1217 = vld [vmem:[%s795] sm:$0xff]
        %1219 = vrot.lane.b32.xlu0 %v1217, 16
        %v1220 = vpop.permute.xlu0 %1219
        %v1222 = vmul.f32 %v1216, %v1220
        %1224 = vrot.lane.b32.xlu0 %v1222, 112
        %v1225 = vpop.permute.xlu0 %1224
        %v1227 = vadd.f32 %v1093, %v1225
        %v1228 = vmul.f32 %v1199, 1.442695
        %v1229 = vpow.pop %v1228
        %v1230 = vld [vmem:[%s805] sm:$0xff]
        %1232 = vrot.lane.b32.xlu0 %v1230, 16
        %v1233 = vpop.permute.xlu0 %1232
        %v1235 = vmul.f32 %v1229, %v1233
        %1237 = vrot.lane.b32.xlu0 %v1235, 112
        %v1238 = vpop.permute.xlu0 %1237
        %v1240 = vadd.f32 %v1199, %v1238
        %v1241 = vpack.c.bf16 %v1227, %v1227
        %v1242 = vpack.c.bf16 %v1240, %v1240
        %v1244 = vsel %vm1202, %v1241, 0
        %v1247 = vsel %vm1202, %v1242, 0
        %1249 = vmatpush.bf16.xpose.msra.mxu0 0
        %1250 = vmatpush.bf16.xpose.msra.mxu0 0
        %1251 = vmatpush.bf16.xpose.msra.mxu0 0
        %1252 = vmatpush.bf16.xpose.msra.mxu0 0
        %1253 = vmatpush.bf16.xpose.msra.mxu0 0
        %1254 = vmatpush.bf16.xpose.msra.mxu0 0
        %1255 = vmatpush.bf16.xpose.msra.mxu0 0
        %1256 = vmatpush.bf16.xpose.msra.mxu0 %v1247
        %1257 = vmatmul.bf16.gmra.mxu0 %v1244
        %v1258 = vpop.f32.mrf.mxu0
        %v1259 = vadd.f32 0.0, %v1258
        %v1260 = vpop.f32.mrf.mxu0
        %1261 = vdwg.mxu0
        %v1262 = vsel %vm958, %v1259, -inf
        %1263 = vmax.xlane.f32.xlu0 %v1262
        %v1264 = vpop.xlane.xlu0 %1263
        %v1265 = vsub.f32 %v1259, %v1264
        %v1266 = vmul.f32 %v1265, 1.442695
        %v1267 = vpow.pop %v1266
        %v1268 = vsel %vm958, %v1267, 0.0
        %1269 = vadd.xlane.f32.xlu0 %v1268
        %v1270 = vpop.xlane.xlu0 %1269
        %v1271 = vrcp.pop %v1270
        %v1272 = vmul.f32 %v1267, %v1271
        %v1273 = vpack.c.bf16 %v1272, %v1272
        %v1275 = vsel %vm958, %v1273, 0
        %v1277 = vsel %vm974, %v1242, 0
        %1279 = vmatpush.bf16.msra.mxu0 0
        %1280 = vmatpush.bf16.msra.mxu0 0
        %1281 = vmatpush.bf16.msra.mxu0 0
        %1282 = vmatpush.bf16.msra.mxu0 0
        %1283 = vmatpush.bf16.msra.mxu0 0
        %1284 = vmatpush.bf16.msra.mxu0 0
        %1285 = vmatpush.bf16.msra.mxu0 0
        %1286 = vmatpush.bf16.msra.mxu0 %v1277
        %1287 = vmatmul.bf16.gmra.mxu0 %v1275
        %v1288 = vpop.f32.mrf.mxu0
        %v1289 = vadd.f32 0.0, %v1288
        %v1290 = vpop.f32.mrf.mxu0
        %1291 = vdwg.mxu0
        %1292 = vmatpush.bf16.xpose.msra.mxu0 0
        %1293 = vmatpush.bf16.xpose.msra.mxu0 0
        %1294 = vmatpush.bf16.xpose.msra.mxu0 0
        %1295 = vmatpush.bf16.xpose.msra.mxu0 0
        %1296 = vmatpush.bf16.xpose.msra.mxu0 0
        %1297 = vmatpush.bf16.xpose.msra.mxu0 0
        %1298 = vmatpush.bf16.xpose.msra.mxu0 0
        %1299 = vmatpush.bf16.xpose.msra.mxu0 %v1244
        %1300 = vmatmul.bf16.gmra.mxu0 %v1247
        %v1301 = vpop.f32.mrf.mxu0
        %v1302 = vadd.f32 0.0, %v1301
        %v1303 = vpop.f32.mrf.mxu0
        %1304 = vdwg.mxu0
        %v1305 = vsel %vm958, %v1302, -inf
        %1306 = vmax.xlane.f32.xlu0 %v1305
        %v1307 = vpop.xlane.xlu0 %1306
        %v1308 = vsub.f32 %v1302, %v1307
        %v1309 = vmul.f32 %v1308, 1.442695
        %v1310 = vpow.pop %v1309
        %v1311 = vsel %vm958, %v1310, 0.0
        %1312 = vadd.xlane.f32.xlu0 %v1311
        %v1313 = vpop.xlane.xlu0 %1312
        %v1314 = vrcp.pop %v1313
        %v1315 = vmul.f32 %v1310, %v1314
        %v1316 = vpack.c.bf16 %v1315, %v1315
        %v1318 = vsel %vm958, %v1316, 0
        %v1320 = vsel %vm974, %v1241, 0
        %1322 = vmatpush.bf16.msra.mxu0 0
        %1323 = vmatpush.bf16.msra.mxu0 0
        %1324 = vmatpush.bf16.msra.mxu0 0
        %1325 = vmatpush.bf16.msra.mxu0 0
        %1326 = vmatpush.bf16.msra.mxu0 0
        %1327 = vmatpush.bf16.msra.mxu0 0
        %1328 = vmatpush.bf16.msra.mxu0 0
        %1329 = vmatpush.bf16.msra.mxu0 %v1320
        %1330 = vmatmul.bf16.gmra.mxu0 %v1318
        %v1331 = vpop.f32.mrf.mxu0
        %v1332 = vadd.f32 0.0, %v1331
        %v1333 = vpop.f32.mrf.mxu0
        %1334 = vdwg.mxu0
        %v1335 = vld [vmem:[%s10] sm:$0xf]
        %v1336 = vld [vmem:[%s10 + $0x4] sm:$0xf]
        %v1337 = vld [vmem:[%s11] sm:$0x1]
        %v1338 = vpack.c.bf16 %v1289, %v1289
        %v1340 = vperm.slane %v1337, 0
        %v1344 = vunpack.c.l.b16 %v1335
        %v1345 = vunpack.c.l.b16 %v1336
        %v1346 = vpack.c.b16 %v1345, %v1344
        %v1349 = vsel %vm1202, %v1338, 0
        %1351 = vmatpush.bf16.msra.mxu0 0
        %1352 = vmatpush.bf16.msra.mxu0 0
        %1353 = vmatpush.bf16.msra.mxu0 0
        %1354 = vmatpush.bf16.msra.mxu0 0
        %1355 = vmatpush.bf16.msra.mxu0 0
        %1356 = vmatpush.bf16.msra.mxu0 0
        %1357 = vmatpush.bf16.msra.mxu0 0
        %1358 = vmatpush.bf16.msra.mxu0 %v1346
        %1359 = vmatmul.bf16.gmra.mxu0 %v1349
        %v1360 = vpop.f32.mrf.mxu0
        %v1361 = vadd.f32 %v1340, %v1360
        %v1362 = vpop.f32.mrf.mxu0
        %1363 = vdwg.mxu0
        %v1364 = vxor.u32 %v1361, 2147483648
        %v1365 = vmul.f32 %v1364, 1.442695
        %v1366 = vpow.pop %v1365
        %v1367 = vadd.f32 %v1366, 1.0
        %v1368 = vrcp.pop %v1367
        %v1369 = vmul.f32 %v1367, %v1368
        %v1370 = vsub.f32 1.0, %v1369
        %v1371 = vmul.f32 %v1368, %v1370
        %v1372 = vadd.f32 %v1368, %v1371
        %vm1373 = vweird.f32 %v1367
        %vm1374 = vweird.f32 %v1368
        %vm1375 = vmor %vm1373, %vm1374
        %v1376 = vsel %vm1375, %v1368, %v1372
        %v1377 = vand.u32 2147483647, %v1367
        %vm1378 = vcmp.eq.f32.partialorder %v1377, 8.507059e+37
        %v1379 = vand.u32 %v1367, 2147483648
        %v1380 = vor.u32 1.1754944e-38, %v1379
        %v1381 = vsel %vm1378, %v1380, %v1376
        %v1382 = vmul.f32 1.0, %v1381
        %1383 = vst.msk [vmem:[%s914] sm:$0xff] %vm940, %v1382
        %v1384 = vld [vmem:[#allocation19] sm:$0xf]
        %v1385 = vld [vmem:[#allocation19 + $0x4] sm:$0xf]
        %v1386 = vld [vmem:[%s13] sm:$0x1]
        %v1387 = vpack.c.bf16 %v1332, %v1332
        %v1389 = vperm.slane %v1386, 0
        %v1393 = vunpack.c.l.b16 %v1384
        %v1394 = vunpack.c.l.b16 %v1385
        %v1395 = vpack.c.b16 %v1394, %v1393
        %v1398 = vsel %vm1202, %v1387, 0
        %1400 = vmatpush.bf16.msra.mxu0 0
        %1401 = vmatpush.bf16.msra.mxu0 0
        %1402 = vmatpush.bf16.msra.mxu0 0
        %1403 = vmatpush.bf16.msra.mxu0 0
        %1404 = vmatpush.bf16.msra.mxu0 0
        %1405 = vmatpush.bf16.msra.mxu0 0
        %1406 = vmatpush.bf16.msra.mxu0 0
        %1407 = vmatpush.bf16.msra.mxu0 %v1395
        %1408 = vmatmul.bf16.gmra.mxu0 %v1398
        %v1409 = vpop.f32.mrf.mxu0
        %v1410 = vadd.f32 %v1389, %v1409
        %v1411 = vpop.f32.mrf.mxu0
        %1412 = vdwg.mxu0
        %v1413 = vxor.u32 %v1410, 2147483648
        %v1414 = vmul.f32 %v1413, 1.442695
        %v1415 = vpow.pop %v1414
        %v1416 = vadd.f32 %v1415, 1.0
        %v1417 = vrcp.pop %v1416
        %v1418 = vmul.f32 %v1416, %v1417
        %v1419 = vsub.f32 1.0, %v1418
        %v1420 = vmul.f32 %v1417, %v1419
        %v1421 = vadd.f32 %v1417, %v1420
        %vm1422 = vweird.f32 %v1416
        %vm1423 = vweird.f32 %v1417
        %vm1424 = vmor %vm1422, %vm1423
        %v1425 = vsel %vm1424, %v1417, %v1421
        %v1426 = vand.u32 2147483647, %v1416
        %vm1427 = vcmp.eq.f32.partialorder %v1426, 8.507059e+37
        %v1428 = vand.u32 %v1416, 2147483648
        %v1429 = vor.u32 1.1754944e-38, %v1428
        %v1430 = vsel %vm1427, %v1429, %v1425
        %v1431 = vmul.f32 1.0, %v1430
        %1432 = vst.msk [vmem:[%s935] sm:$0xff] %vm940, %v1431
        %s1433 = sand.u32 %s389, 1
        %s1434 = scalar_lea.sflag [#allocation4], %s1433
        %s1435 = sand.u32 %s389, 1
        %s1436 = smul.addr %s1435, 8
        %s1437 = scalar_lea.vmem [#allocation20], %s1436
        %s1438 = sand.u32 %s57, 1
        %s1439 = scalar_lea.sflag [#allocation22], %s1438
        %s1440 = sand.u32 %s415, 1
        %s1441 = smul.addr %s1440, 8
        %s1442 = scalar_lea.vmem [#allocation21], %s1441
        %s1443 = sand.u32 %s57, 1
        %s1444 = scalar_lea.sflag [#allocation22], %s1443
        %s1445 = sand.u32 %s441, 1
        %s1446 = smul.addr %s1445, 8
        %s1447 = scalar_lea.vmem [#allocation23], %s1446
        %s1448 = sand.u32 %s57, 1
        %s1449 = scalar_lea.sflag [#allocation25], %s1448
        %s1450 = sand.u32 %s467, 1
        %s1451 = smul.addr %s1450, 8
        %s1452 = scalar_lea.vmem [#allocation24], %s1451
        %s1453 = sand.u32 %s57, 1
        %s1454 = scalar_lea.sflag [#allocation25], %s1453
        %s1455 = sand.u32 %s493, 1
        %s1456 = smul.addr %s1455, 8
        %s1457 = scalar_lea.vmem [#allocation26], %s1456
        %s1458 = sand.u32 %s519, 1
        %s1459 = scalar_lea.sflag [#allocation28], %s1458
        %s1460 = sand.u32 %s519, 1
        %s1461 = smul.addr %s1460, 8
        %s1462 = scalar_lea.vmem [#allocation27], %s1461
        // Predicated region
        $region121: #{tpu_custom_call.1} parent=75 // pred_check
          %p1463 = pneg %p399
        $region122: #{tpu_custom_call.1} parent=75 // pred_check_branch
          %1465 = sbr.rel (%p1463) target = $region124
        $region123: #{tpu_custom_call.1} parent=75 // pred_region
          %1467 = vsyncadd %s1434, 0
          %s1468 = smul.addr %s57, 8
          %s1469 = scalar_lea.hbm %s14, %s1468
          %s1471 = sshll.u32 %s1437, 4
          %s1472 = int_to_ptr.vmem [resolvable:$true] %s1471
          %s1473 = sshll.u32 %s1469, 4
          %s1474 = int_to_ptr.hbm [resolvable:$true] %s1473
          %1476 = dma.vmem_to_hbm [thread:$0]  %s1472, 128, %s1474, %s1434
        $region124: #{tpu_custom_call.1} parent=75 // pred_fallthru
          _
        // Predicated region
        $region125: #{tpu_custom_call.1} parent=75 // pred_check
          %p1477 = pneg %p425
        $region126: #{tpu_custom_call.1} parent=75 // pred_check_branch
          %1479 = sbr.rel (%p1477) target = $region128
        $region127: #{tpu_custom_call.1} parent=75 // pred_region
          %1481 = vsyncadd %s1439, 0
          %s1482 = smul.addr %s57, 8
          %s1483 = scalar_lea.hbm %s15, %s1482
          %s1485 = sshll.u32 %s1442, 4
          %s1486 = int_to_ptr.vmem [resolvable:$true] %s1485
          %s1487 = sshll.u32 %s1483, 4
          %s1488 = int_to_ptr.hbm [resolvable:$true] %s1487
          %1490 = dma.vmem_to_hbm [thread:$0]  %s1486, 128, %s1488, %s1439
        $region128: #{tpu_custom_call.1} parent=75 // pred_fallthru
          _
        // Predicated region
        $region129: #{tpu_custom_call.1} parent=75 // pred_check
          %p1491 = pneg %p451
        $region130: #{tpu_custom_call.1} parent=75 // pred_check_branch
          %1493 = sbr.rel (%p1491) target = $region132
        $region131: #{tpu_custom_call.1} parent=75 // pred_region
          %1495 = vsyncadd %s1444, 0
          %s1496 = smul.addr %s57, 8
          %s1497 = scalar_lea.hbm %s16, %s1496
          %s1499 = sshll.u32 %s1447, 4
          %s1500 = int_to_ptr.vmem [resolvable:$true] %s1499
          %s1501 = sshll.u32 %s1497, 4
          %s1502 = int_to_ptr.hbm [resolvable:$true] %s1501
          %1504 = dma.vmem_to_hbm [thread:$0]  %s1500, 128, %s1502, %s1444
        $region132: #{tpu_custom_call.1} parent=75 // pred_fallthru
          _
        // Predicated region
        $region133: #{tpu_custom_call.1} parent=75 // pred_check
          %p1505 = pneg %p477
        $region134: #{tpu_custom_call.1} parent=75 // pred_check_branch
          %1507 = sbr.rel (%p1505) target = $region136
        $region135: #{tpu_custom_call.1} parent=75 // pred_region
          %1509 = vsyncadd %s1449, 0
          %s1510 = smul.addr %s57, 8
          %s1511 = scalar_lea.hbm %s17, %s1510
          %s1513 = sshll.u32 %s1452, 4
          %s1514 = int_to_ptr.vmem [resolvable:$true] %s1513
          %s1515 = sshll.u32 %s1511, 4
          %s1516 = int_to_ptr.hbm [resolvable:$true] %s1515
          %1518 = dma.vmem_to_hbm [thread:$0]  %s1514, 128, %s1516, %s1449
        $region136: #{tpu_custom_call.1} parent=75 // pred_fallthru
          _
        // Predicated region
        $region137: #{tpu_custom_call.1} parent=75 // pred_check
          %p1519 = pneg %p503
        $region138: #{tpu_custom_call.1} parent=75 // pred_check_branch
          %1521 = sbr.rel (%p1519) target = $region140
        $region139: #{tpu_custom_call.1} parent=75 // pred_region
          %1523 = vsyncadd %s1454, 0
          %s1524 = smul.addr %s57, 8
          %s1525 = scalar_lea.hbm %s18, %s1524
          %s1527 = sshll.u32 %s1457, 4
          %s1528 = int_to_ptr.vmem [resolvable:$true] %s1527
          %s1529 = sshll.u32 %s1525, 4
          %s1530 = int_to_ptr.hbm [resolvable:$true] %s1529
          %1532 = dma.vmem_to_hbm [thread:$0]  %s1528, 128, %s1530, %s1454
        $region140: #{tpu_custom_call.1} parent=75 // pred_fallthru
          _
        // Predicated region
        $region141: #{tpu_custom_call.1} parent=75 // pred_check
          %p1533 = pneg %p529
        $region142: #{tpu_custom_call.1} parent=75 // pred_check_branch
          %1535 = sbr.rel (%p1533) target = $region144
        $region143: #{tpu_custom_call.1} parent=75 // pred_region
          %1537 = vsyncadd %s1459, 0
          %s1538 = smul.addr %s57, 8
          %s1539 = scalar_lea.hbm %s19, %s1538
          %s1541 = sshll.u32 %s1462, 4
          %s1542 = int_to_ptr.vmem [resolvable:$true] %s1541
          %s1543 = sshll.u32 %s1539, 4
          %s1544 = int_to_ptr.hbm [resolvable:$true] %s1543
          %1546 = dma.vmem_to_hbm [thread:$0]  %s1542, 128, %s1544, %s1459
        $region144: #{tpu_custom_call.1} parent=75 // pred_fallthru
          _
      $region76: #{tpu_custom_call.1} parent=5 // pred_fallthru
        _
      %p1547 = scmp.le.s32.totalorder 2, %s52
      // Predicated region
      $region145: #{tpu_custom_call.1} parent=5 // pred_check
        %p1548 = pneg %p1547
      $region146: #{tpu_custom_call.1} parent=5 // pred_check_branch
        %1550 = sbr.rel (%p1548) target = $region148
      $region147: #{tpu_custom_call.1} parent=5 // pred_region
        %s1551 = ssub.s32 %s52, 2
        // Predicated region
        $region149: #{tpu_custom_call.1} parent=147 // pred_check
          %p1552 = pneg %p405
        $region150: #{tpu_custom_call.1} parent=147 // pred_check_branch
          %1554 = sbr.rel (%p1552) target = $region152
        $region151: #{tpu_custom_call.1} parent=147 // pred_region
          %s1555 = sand.u32 %s390, 1
          %s1556 = scalar_lea.sflag [#allocation4], %s1555
          %s1557 = sand.u32 %s390, 1
          %s1558 = smul.addr %s1557, 8
          %s1559 = scalar_lea.vmem [#allocation20], %s1558
          %1561 = dma.done %s1556, 128
        $region152: #{tpu_custom_call.1} parent=147 // pred_fallthru
          _
        // Predicated region
        $region153: #{tpu_custom_call.1} parent=147 // pred_check
          %p1562 = pneg %p431
        $region154: #{tpu_custom_call.1} parent=147 // pred_check_branch
          %1564 = sbr.rel (%p1562) target = $region156
        $region155: #{tpu_custom_call.1} parent=147 // pred_region
          %s1565 = sand.u32 %s58, 1
          %s1566 = scalar_lea.sflag [#allocation22], %s1565
          %s1567 = sand.u32 %s416, 1
          %s1568 = smul.addr %s1567, 8
          %s1569 = scalar_lea.vmem [#allocation21], %s1568
          %1571 = dma.done %s1566, 128
        $region156: #{tpu_custom_call.1} parent=147 // pred_fallthru
          _
        // Predicated region
        $region157: #{tpu_custom_call.1} parent=147 // pred_check
          %p1572 = pneg %p457
        $region158: #{tpu_custom_call.1} parent=147 // pred_check_branch
          %1574 = sbr.rel (%p1572) target = $region160
        $region159: #{tpu_custom_call.1} parent=147 // pred_region
          %s1575 = sand.u32 %s58, 1
          %s1576 = scalar_lea.sflag [#allocation22], %s1575
          %s1577 = sand.u32 %s442, 1
          %s1578 = smul.addr %s1577, 8
          %s1579 = scalar_lea.vmem [#allocation23], %s1578
          %1581 = dma.done %s1576, 128
        $region160: #{tpu_custom_call.1} parent=147 // pred_fallthru
          _
        // Predicated region
        $region161: #{tpu_custom_call.1} parent=147 // pred_check
          %p1582 = pneg %p483
        $region162: #{tpu_custom_call.1} parent=147 // pred_check_branch
          %1584 = sbr.rel (%p1582) target = $region164
        $region163: #{tpu_custom_call.1} parent=147 // pred_region
          %s1585 = sand.u32 %s58, 1
          %s1586 = scalar_lea.sflag [#allocation25], %s1585
          %s1587 = sand.u32 %s468, 1
          %s1588 = smul.addr %s1587, 8
          %s1589 = scalar_lea.vmem [#allocation24], %s1588
          %1591 = dma.done %s1586, 128
        $region164: #{tpu_custom_call.1} parent=147 // pred_fallthru
          _
        // Predicated region
        $region165: #{tpu_custom_call.1} parent=147 // pred_check
          %p1592 = pneg %p509
        $region166: #{tpu_custom_call.1} parent=147 // pred_check_branch
          %1594 = sbr.rel (%p1592) target = $region168
        $region167: #{tpu_custom_call.1} parent=147 // pred_region
          %s1595 = sand.u32 %s58, 1
          %s1596 = scalar_lea.sflag [#allocation25], %s1595
          %s1597 = sand.u32 %s494, 1
          %s1598 = smul.addr %s1597, 8
          %s1599 = scalar_lea.vmem [#allocation26], %s1598
          %1601 = dma.done %s1596, 128
        $region168: #{tpu_custom_call.1} parent=147 // pred_fallthru
          _
        // Predicated region
        $region169: #{tpu_custom_call.1} parent=147 // pred_check
          %p1602 = pneg %p535
        $region170: #{tpu_custom_call.1} parent=147 // pred_check_branch
          %1604 = sbr.rel (%p1602) target = $region172
        $region171: #{tpu_custom_call.1} parent=147 // pred_region
          %s1605 = sand.u32 %s520, 1
          %s1606 = scalar_lea.sflag [#allocation28], %s1605
          %s1607 = sand.u32 %s520, 1
          %s1608 = smul.addr %s1607, 8
          %s1609 = scalar_lea.vmem [#allocation27], %s1608
          %1611 = dma.done %s1606, 128
        $region172: #{tpu_custom_call.1} parent=147 // pred_fallthru
          _
      $region148: #{tpu_custom_call.1} parent=5 // pred_fallthru
        _
    $region6: #{tpu_custom_call.1} parent=1 // loop_footer
      %s56 = sadd.s32 1, %s52
    $region7: #{tpu_custom_call.1} parent=1 // loop_footer_branch
      %51 = sbr.rel target = $region3
    $region8: #{tpu_custom_call.1} parent=1 // loop_exit
      _
    %1612 = vsyncpa [#allocation3], 1
    %s1613 = scalar_lea.sflag [#allocation3], 1
    %1614 = vsyncpa %s1613, 1
    %1615 = vsyncpa [#allocation6], 1
    %s1616 = scalar_lea.sflag [#allocation6], 1
    %1617 = vsyncpa %s1616, 1
    %1618 = vsyncpa [#allocation9], 1
    %s1619 = scalar_lea.sflag [#allocation9], 1
    %1620 = vsyncpa %s1619, 1
    %1621 = vsyncpa [#allocation12], 1
    %s1622 = scalar_lea.sflag [#allocation12], 1
    %1623 = vsyncpa %s1622, 1
    %1624 = vsyncpa [#allocation15], 1
    %1625 = vsyncpa [#allocation18], 1
    %1626 = vsyncpa [#allocation4], 1
    %s1627 = scalar_lea.sflag [#allocation4], 1
    %1628 = vsyncpa %s1627, 1
    %1629 = vsyncpa [#allocation22], 1
    %s1630 = scalar_lea.sflag [#allocation22], 1
    %1631 = vsyncpa %s1630, 1
    %1632 = vsyncpa [#allocation25], 1
    %s1633 = scalar_lea.sflag [#allocation25], 1
    %1634 = vsyncpa %s1633, 1
    %1635 = vsyncpa [#allocation28], 1
    %s1636 = scalar_lea.sflag [#allocation28], 1
    %1637 = vsyncpa %s1636, 1

</llo_original>
